<compile_context>
chip_gen: v7x
topology: tpu7x:2x2x1
jax: 0.10.0
libtpu: 0.0.40
codegen_flags: <defaults>
</compile_context>

<pallas_src>
import functools

import jax
import jax.numpy as jnp
import numpy as np
from jax import lax
from jax.experimental import pallas as pl
from jax.experimental.pallas import tpu as pltpu

HIDDEN_DIM = 50
INPUT_DIM = 1
OUTPUT_DIM = 1

LANE = 128     # lanes per gate slab (vreg lane width)
SUBLANE = 8    # sublane multiple for batch padding


def _round_up(n, m):
    return (n + m - 1) // m * m


def lstm_kernel(gates_in_ref, whh_ref, fcw_ref, fcb_ref, out_ref, *,
                seq_len, hp):
    """Full LSTM in one invocation.

    gates_in_ref: (T, BP, 4*HP)  precomputed x @ W_ih^T + b (lane-aligned gates)
    whh_ref:      (HP, 4*HP)     W_hh^T, zero-padded
    fcw_ref:      (HP, OP)       fc weight^T, zero-padded
    fcb_ref:      (1, OP)        fc bias, zero-padded
    out_ref:      (BP, OP)
    """
    bp = out_ref.shape[0]
    whh = whh_ref[...]                                     # hoisted weight load

    def step(t, carry):
        h, c = carry
        gates = gates_in_ref[t] + jnp.dot(
            h, whh, preferred_element_type=jnp.float32)    # (BP, 4*HP)
        # 128-lane-aligned gate slabs: pure whole-vreg slices.
        i_g = jax.nn.sigmoid(gates[:, 0 * hp:1 * hp])
        f_g = jax.nn.sigmoid(gates[:, 1 * hp:2 * hp])
        g_g = jnp.tanh(gates[:, 2 * hp:3 * hp])
        o_g = jax.nn.sigmoid(gates[:, 3 * hp:4 * hp])
        c_new = f_g * c + i_g * g_g
        h_new = o_g * jnp.tanh(c_new)
        return h_new, c_new

    h0 = jnp.zeros((bp, hp), jnp.float32)
    c0 = jnp.zeros((bp, hp), jnp.float32)
    h_last, _ = lax.fori_loop(0, seq_len, step, (h0, c0), unroll=True)

    out_ref[...] = (
        jnp.dot(h_last, fcw_ref[...], preferred_element_type=jnp.float32)
        + fcb_ref[...]
    ).astype(out_ref.dtype)


def lstm_model_forward(x, w_ih, w_hh, b_ih, b_hh, fc_w, fc_b,
                       *, hidden_dim=HIDDEN_DIM):
    """x: (B, T, I) float32 (batch_first). Returns (B, output_dim)."""
    B, T, I = x.shape
    H = hidden_dim
    O = fc_w.shape[0]
    HP = _round_up(H, LANE)       # 128
    OP = _round_up(O, LANE)       # 128
    BP = _round_up(B, SUBLANE)    # 8

    f32 = jnp.float32
    x = x.astype(f32)

    # --- hoisted input projection (no time dependency) -----------------------
    gates_in = jnp.einsum('bti,gi->btg', x, w_ih.astype(f32)) \
        + (b_ih + b_hh).astype(f32)                                # (B, T, 4H)
    # Lane-align: each gate into its own zero-padded 128-lane slab.
    gates_in = gates_in.reshape(B, T, 4, H)
    gates_in = jnp.pad(gates_in, ((0, BP - B), (0, 0), (0, 0), (0, HP - H)))
    gates_in = jnp.transpose(gates_in, (1, 0, 2, 3)).reshape(T, BP, 4 * HP)

    # --- W_hh^T padded to (HP, 4*HP); zero pad keeps padded h/c lanes at 0 ---
    whh_t = jnp.transpose(w_hh.astype(f32)).reshape(H, 4, H)       # [k, gate, j]
    whh_p = jnp.pad(whh_t, ((0, HP - H), (0, 0), (0, HP - H))).reshape(HP, 4 * HP)

    # --- fc weights/bias, zero padded ----------------------------------------
    fcw_p = jnp.pad(jnp.transpose(fc_w.astype(f32)), ((0, HP - H), (0, OP - O)))
    fcb_p = jnp.pad(fc_b.astype(f32), (0, OP - O)).reshape(1, OP)

    kernel = functools.partial(lstm_kernel, seq_len=T, hp=HP)
    vmem_spec = pl.BlockSpec(memory_space=pltpu.MemorySpace.VMEM)

    out_padded = pl.pallas_call(
        kernel,
        out_shape=jax.ShapeDtypeStruct((BP, OP), f32),
        in_specs=[vmem_spec, vmem_spec, vmem_spec, vmem_spec],
        out_specs=vmem_spec,
    )(gates_in, whh_p, fcw_p, fcb_p)

    return out_padded[:B, :O]


def lstm_model_reference(x, w_ih, w_hh, b_ih, b_hh, fc_w, fc_b,
                         *, hidden_dim=HIDDEN_DIM):
    """Pure-JAX reference (matches PyTorch nn.LSTM semantics)."""
    B, T, I = x.shape
    H = hidden_dim

    def step(carry, x_t):
        h, c = carry
        gates = x_t @ w_ih.T + h @ w_hh.T + b_ih + b_hh
        i = jax.nn.sigmoid(gates[:, 0 * H:1 * H])
        f = jax.nn.sigmoid(gates[:, 1 * H:2 * H])
        g = jnp.tanh(gates[:, 2 * H:3 * H])
        o = jax.nn.sigmoid(gates[:, 3 * H:4 * H])
        c = f * c + i * g
        h = o * jnp.tanh(c)
        return (h, c), None

    h0 = jnp.zeros((B, H), jnp.float32)
    c0 = jnp.zeros((B, H), jnp.float32)
    (hT, _), _ = jax.lax.scan(step, (h0, c0), jnp.swapaxes(x, 0, 1))
    return hT @ fc_w.T + fc_b


if __name__ == "__main__":
    B, T = 2, 8
    H, I, O = HIDDEN_DIM, INPUT_DIM, OUTPUT_DIM

    key = jax.random.PRNGKey(0)
    kx, k1, k2, k3, k4, k5, k6 = jax.random.split(key, 7)

    bound = 1.0 / np.sqrt(H)  # PyTorch default LSTM/Linear init range
    x = jax.random.normal(kx, (B, T, I), dtype=jnp.float32)
    w_ih = jax.random.uniform(k1, (4 * H, I), jnp.float32, -bound, bound)
    w_hh = jax.random.uniform(k2, (4 * H, H), jnp.float32, -bound, bound)
    b_ih = jax.random.uniform(k3, (4 * H,), jnp.float32, -bound, bound)
    b_hh = jax.random.uniform(k4, (4 * H,), jnp.float32, -bound, bound)
    fc_w = jax.random.uniform(k5, (O, H), jnp.float32, -bound, bound)
    fc_b = jax.random.uniform(k6, (O,), jnp.float32, -bound, bound)

    out = lstm_model_forward(x, w_ih, w_hh, b_ih, b_hh, fc_w, fc_b)
    out = jax.block_until_ready(out)

    ref = lstm_model_reference(x, w_ih, w_hh, b_ih, b_hh, fc_w, fc_b)
    np.testing.assert_allclose(np.asarray(out), np.asarray(ref),
                               rtol=1e-4, atol=1e-5)
    assert out.shape == (B, O)
    print("KERNEL_OK")
</pallas_src>

<mosaic_0001>
module attributes {stable_mosaic.version = 11 : i64} {
  func.func @lstm_kernel(%arg0: memref<8x8x512xf32, #tpu.memory_space<vmem>>, %arg1: memref<128x512xf32, #tpu.memory_space<vmem>>, %arg2: memref<128x128xf32, #tpu.memory_space<vmem>>, %arg3: memref<1x128xf32, #tpu.memory_space<vmem>>, %arg4: memref<8x128xf32, #tpu.memory_space<vmem>>) attributes {dimension_semantics = [], scalar_prefetch = 0 : i64, scratch_operands = 0 : i64, tpu.core_type = #tpu.core_type<tc>} {
    %c0 = arith.constant 0 : index
    %c0_0 = arith.constant 0 : index
    %0 = vector.load %arg1[%c0, %c0_0] : memref<128x512xf32, #tpu.memory_space<vmem>>, vector<128x512xf32>
    %cst = arith.constant 0.000000e+00 : f32
    %1 = vector.broadcast %cst : f32 to vector<8x128xf32>
    %cst_1 = arith.constant 0.000000e+00 : f32
    %2 = vector.broadcast %cst_1 : f32 to vector<8x128xf32>
    %c0_i32 = arith.constant 0 : i32
    %3 = arith.index_cast %c0_i32 : i32 to index
    %c0_2 = arith.constant 0 : index
    %c0_3 = arith.constant 0 : index
    %4 = vector.load %arg0[%3, %c0_2, %c0_3] : memref<8x8x512xf32, #tpu.memory_space<vmem>>, vector<1x8x512xf32>
    %5 = vector.shape_cast %4 : vector<1x8x512xf32> to vector<8x512xf32>
    %cst_4 = arith.constant dense<0.000000e+00> : vector<8x512xf32>
    %6 = tpu.matmul %1, %0, %cst_4 {dimension_numbers = #tpu.dot_dimension_numbers<[1], [0], [0], [1], [0, 0, 1, 1], [], []>} : vector<8x128xf32>, vector<128x512xf32>, vector<8x512xf32> -> vector<8x512xf32>
    %7 = arith.addf %5, %6 : vector<8x512xf32>
    %8 = vector.extract_strided_slice %7 {offsets = [0, 0], sizes = [8, 128], strides = [1, 1]} : vector<8x512xf32> to vector<8x128xf32>
    %9 = arith.negf %8 : vector<8x128xf32>
    %10 = math.exp %9 : vector<8x128xf32>
    %cst_5 = arith.constant 1.000000e+00 : f32
    %11 = vector.broadcast %cst_5 : f32 to vector<8x128xf32>
    %12 = arith.addf %11, %10 : vector<8x128xf32>
    %13 = arith.divf %11, %12 : vector<8x128xf32>
    %14 = vector.extract_strided_slice %7 {offsets = [0, 128], sizes = [8, 128], strides = [1, 1]} : vector<8x512xf32> to vector<8x128xf32>
    %15 = arith.negf %14 : vector<8x128xf32>
    %16 = math.exp %15 : vector<8x128xf32>
    %cst_6 = arith.constant 1.000000e+00 : f32
    %17 = vector.broadcast %cst_6 : f32 to vector<8x128xf32>
    %18 = arith.addf %17, %16 : vector<8x128xf32>
    %19 = arith.divf %17, %18 : vector<8x128xf32>
    %20 = vector.extract_strided_slice %7 {offsets = [0, 256], sizes = [8, 128], strides = [1, 1]} : vector<8x512xf32> to vector<8x128xf32>
    %21 = math.tanh %20 : vector<8x128xf32>
    %22 = vector.extract_strided_slice %7 {offsets = [0, 384], sizes = [8, 128], strides = [1, 1]} : vector<8x512xf32> to vector<8x128xf32>
    %23 = arith.negf %22 : vector<8x128xf32>
    %24 = math.exp %23 : vector<8x128xf32>
    %cst_7 = arith.constant 1.000000e+00 : f32
    %25 = vector.broadcast %cst_7 : f32 to vector<8x128xf32>
    %26 = arith.addf %25, %24 : vector<8x128xf32>
    %27 = arith.divf %25, %26 : vector<8x128xf32>
    %28 = arith.mulf %19, %2 : vector<8x128xf32>
    %29 = arith.mulf %13, %21 : vector<8x128xf32>
    %30 = arith.addf %28, %29 : vector<8x128xf32>
    %31 = math.tanh %30 : vector<8x128xf32>
    %32 = arith.mulf %27, %31 : vector<8x128xf32>
    %c1_i32 = arith.constant 1 : i32
    %33 = arith.index_cast %c1_i32 : i32 to index
    %c0_8 = arith.constant 0 : index
    %c0_9 = arith.constant 0 : index
    %34 = vector.load %arg0[%33, %c0_8, %c0_9] : memref<8x8x512xf32, #tpu.memory_space<vmem>>, vector<1x8x512xf32>
    %35 = vector.shape_cast %34 : vector<1x8x512xf32> to vector<8x512xf32>
    %cst_10 = arith.constant dense<0.000000e+00> : vector<8x512xf32>
    %36 = tpu.matmul %32, %0, %cst_10 {dimension_numbers = #tpu.dot_dimension_numbers<[1], [0], [0], [1], [0, 0, 1, 1], [], []>} : vector<8x128xf32>, vector<128x512xf32>, vector<8x512xf32> -> vector<8x512xf32>
    %37 = arith.addf %35, %36 : vector<8x512xf32>
    %38 = vector.extract_strided_slice %37 {offsets = [0, 0], sizes = [8, 128], strides = [1, 1]} : vector<8x512xf32> to vector<8x128xf32>
    %39 = arith.negf %38 : vector<8x128xf32>
    %40 = math.exp %39 : vector<8x128xf32>
    %cst_11 = arith.constant 1.000000e+00 : f32
    %41 = vector.broadcast %cst_11 : f32 to vector<8x128xf32>
    %42 = arith.addf %41, %40 : vector<8x128xf32>
    %43 = arith.divf %41, %42 : vector<8x128xf32>
    %44 = vector.extract_strided_slice %37 {offsets = [0, 128], sizes = [8, 128], strides = [1, 1]} : vector<8x512xf32> to vector<8x128xf32>
    %45 = arith.negf %44 : vector<8x128xf32>
    %46 = math.exp %45 : vector<8x128xf32>
    %cst_12 = arith.constant 1.000000e+00 : f32
    %47 = vector.broadcast %cst_12 : f32 to vector<8x128xf32>
    %48 = arith.addf %47, %46 : vector<8x128xf32>
    %49 = arith.divf %47, %48 : vector<8x128xf32>
    %50 = vector.extract_strided_slice %37 {offsets = [0, 256], sizes = [8, 128], strides = [1, 1]} : vector<8x512xf32> to vector<8x128xf32>
    %51 = math.tanh %50 : vector<8x128xf32>
    %52 = vector.extract_strided_slice %37 {offsets = [0, 384], sizes = [8, 128], strides = [1, 1]} : vector<8x512xf32> to vector<8x128xf32>
    %53 = arith.negf %52 : vector<8x128xf32>
    %54 = math.exp %53 : vector<8x128xf32>
    %cst_13 = arith.constant 1.000000e+00 : f32
    %55 = vector.broadcast %cst_13 : f32 to vector<8x128xf32>
    %56 = arith.addf %55, %54 : vector<8x128xf32>
    %57 = arith.divf %55, %56 : vector<8x128xf32>
    %58 = arith.mulf %49, %30 : vector<8x128xf32>
    %59 = arith.mulf %43, %51 : vector<8x128xf32>
    %60 = arith.addf %58, %59 : vector<8x128xf32>
    %61 = math.tanh %60 : vector<8x128xf32>
    %62 = arith.mulf %57, %61 : vector<8x128xf32>
    %c2_i32 = arith.constant 2 : i32
    %63 = arith.index_cast %c2_i32 : i32 to index
    %c0_14 = arith.constant 0 : index
    %c0_15 = arith.constant 0 : index
    %64 = vector.load %arg0[%63, %c0_14, %c0_15] : memref<8x8x512xf32, #tpu.memory_space<vmem>>, vector<1x8x512xf32>
    %65 = vector.shape_cast %64 : vector<1x8x512xf32> to vector<8x512xf32>
    %cst_16 = arith.constant dense<0.000000e+00> : vector<8x512xf32>
    %66 = tpu.matmul %62, %0, %cst_16 {dimension_numbers = #tpu.dot_dimension_numbers<[1], [0], [0], [1], [0, 0, 1, 1], [], []>} : vector<8x128xf32>, vector<128x512xf32>, vector<8x512xf32> -> vector<8x512xf32>
    %67 = arith.addf %65, %66 : vector<8x512xf32>
    %68 = vector.extract_strided_slice %67 {offsets = [0, 0], sizes = [8, 128], strides = [1, 1]} : vector<8x512xf32> to vector<8x128xf32>
    %69 = arith.negf %68 : vector<8x128xf32>
    %70 = math.exp %69 : vector<8x128xf32>
    %cst_17 = arith.constant 1.000000e+00 : f32
    %71 = vector.broadcast %cst_17 : f32 to vector<8x128xf32>
    %72 = arith.addf %71, %70 : vector<8x128xf32>
    %73 = arith.divf %71, %72 : vector<8x128xf32>
    %74 = vector.extract_strided_slice %67 {offsets = [0, 128], sizes = [8, 128], strides = [1, 1]} : vector<8x512xf32> to vector<8x128xf32>
    %75 = arith.negf %74 : vector<8x128xf32>
    %76 = math.exp %75 : vector<8x128xf32>
    %cst_18 = arith.constant 1.000000e+00 : f32
    %77 = vector.broadcast %cst_18 : f32 to vector<8x128xf32>
    %78 = arith.addf %77, %76 : vector<8x128xf32>
    %79 = arith.divf %77, %78 : vector<8x128xf32>
    %80 = vector.extract_strided_slice %67 {offsets = [0, 256], sizes = [8, 128], strides = [1, 1]} : vector<8x512xf32> to vector<8x128xf32>
    %81 = math.tanh %80 : vector<8x128xf32>
    %82 = vector.extract_strided_slice %67 {offsets = [0, 384], sizes = [8, 128], strides = [1, 1]} : vector<8x512xf32> to vector<8x128xf32>
    %83 = arith.negf %82 : vector<8x128xf32>
    %84 = math.exp %83 : vector<8x128xf32>
    %cst_19 = arith.constant 1.000000e+00 : f32
    %85 = vector.broadcast %cst_19 : f32 to vector<8x128xf32>
    %86 = arith.addf %85, %84 : vector<8x128xf32>
    %87 = arith.divf %85, %86 : vector<8x128xf32>
    %88 = arith.mulf %79, %60 : vector<8x128xf32>
    %89 = arith.mulf %73, %81 : vector<8x128xf32>
    %90 = arith.addf %88, %89 : vector<8x128xf32>
    %91 = math.tanh %90 : vector<8x128xf32>
    %92 = arith.mulf %87, %91 : vector<8x128xf32>
    %c3_i32 = arith.constant 3 : i32
    %93 = arith.index_cast %c3_i32 : i32 to index
    %c0_20 = arith.constant 0 : index
    %c0_21 = arith.constant 0 : index
    %94 = vector.load %arg0[%93, %c0_20, %c0_21] : memref<8x8x512xf32, #tpu.memory_space<vmem>>, vector<1x8x512xf32>
    %95 = vector.shape_cast %94 : vector<1x8x512xf32> to vector<8x512xf32>
    %cst_22 = arith.constant dense<0.000000e+00> : vector<8x512xf32>
    %96 = tpu.matmul %92, %0, %cst_22 {dimension_numbers = #tpu.dot_dimension_numbers<[1], [0], [0], [1], [0, 0, 1, 1], [], []>} : vector<8x128xf32>, vector<128x512xf32>, vector<8x512xf32> -> vector<8x512xf32>
    %97 = arith.addf %95, %96 : vector<8x512xf32>
    %98 = vector.extract_strided_slice %97 {offsets = [0, 0], sizes = [8, 128], strides = [1, 1]} : vector<8x512xf32> to vector<8x128xf32>
    %99 = arith.negf %98 : vector<8x128xf32>
    %100 = math.exp %99 : vector<8x128xf32>
    %cst_23 = arith.constant 1.000000e+00 : f32
    %101 = vector.broadcast %cst_23 : f32 to vector<8x128xf32>
    %102 = arith.addf %101, %100 : vector<8x128xf32>
    %103 = arith.divf %101, %102 : vector<8x128xf32>
    %104 = vector.extract_strided_slice %97 {offsets = [0, 128], sizes = [8, 128], strides = [1, 1]} : vector<8x512xf32> to vector<8x128xf32>
    %105 = arith.negf %104 : vector<8x128xf32>
    %106 = math.exp %105 : vector<8x128xf32>
    %cst_24 = arith.constant 1.000000e+00 : f32
    %107 = vector.broadcast %cst_24 : f32 to vector<8x128xf32>
    %108 = arith.addf %107, %106 : vector<8x128xf32>
    %109 = arith.divf %107, %108 : vector<8x128xf32>
    %110 = vector.extract_strided_slice %97 {offsets = [0, 256], sizes = [8, 128], strides = [1, 1]} : vector<8x512xf32> to vector<8x128xf32>
    %111 = math.tanh %110 : vector<8x128xf32>
    %112 = vector.extract_strided_slice %97 {offsets = [0, 384], sizes = [8, 128], strides = [1, 1]} : vector<8x512xf32> to vector<8x128xf32>
    %113 = arith.negf %112 : vector<8x128xf32>
    %114 = math.exp %113 : vector<8x128xf32>
    %cst_25 = arith.constant 1.000000e+00 : f32
    %115 = vector.broadcast %cst_25 : f32 to vector<8x128xf32>
    %116 = arith.addf %115, %114 : vector<8x128xf32>
    %117 = arith.divf %115, %116 : vector<8x128xf32>
    %118 = arith.mulf %109, %90 : vector<8x128xf32>
    %119 = arith.mulf %103, %111 : vector<8x128xf32>
    %120 = arith.addf %118, %119 : vector<8x128xf32>
    %121 = math.tanh %120 : vector<8x128xf32>
    %122 = arith.mulf %117, %121 : vector<8x128xf32>
    %c4_i32 = arith.constant 4 : i32
    %123 = arith.index_cast %c4_i32 : i32 to index
    %c0_26 = arith.constant 0 : index
    %c0_27 = arith.constant 0 : index
    %124 = vector.load %arg0[%123, %c0_26, %c0_27] : memref<8x8x512xf32, #tpu.memory_space<vmem>>, vector<1x8x512xf32>
    %125 = vector.shape_cast %124 : vector<1x8x512xf32> to vector<8x512xf32>
    %cst_28 = arith.constant dense<0.000000e+00> : vector<8x512xf32>
    %126 = tpu.matmul %122, %0, %cst_28 {dimension_numbers = #tpu.dot_dimension_numbers<[1], [0], [0], [1], [0, 0, 1, 1], [], []>} : vector<8x128xf32>, vector<128x512xf32>, vector<8x512xf32> -> vector<8x512xf32>
    %127 = arith.addf %125, %126 : vector<8x512xf32>
    %128 = vector.extract_strided_slice %127 {offsets = [0, 0], sizes = [8, 128], strides = [1, 1]} : vector<8x512xf32> to vector<8x128xf32>
    %129 = arith.negf %128 : vector<8x128xf32>
    %130 = math.exp %129 : vector<8x128xf32>
    %cst_29 = arith.constant 1.000000e+00 : f32
    %131 = vector.broadcast %cst_29 : f32 to vector<8x128xf32>
    %132 = arith.addf %131, %130 : vector<8x128xf32>
    %133 = arith.divf %131, %132 : vector<8x128xf32>
    %134 = vector.extract_strided_slice %127 {offsets = [0, 128], sizes = [8, 128], strides = [1, 1]} : vector<8x512xf32> to vector<8x128xf32>
    %135 = arith.negf %134 : vector<8x128xf32>
    %136 = math.exp %135 : vector<8x128xf32>
    %cst_30 = arith.constant 1.000000e+00 : f32
    %137 = vector.broadcast %cst_30 : f32 to vector<8x128xf32>
    %138 = arith.addf %137, %136 : vector<8x128xf32>
    %139 = arith.divf %137, %138 : vector<8x128xf32>
    %140 = vector.extract_strided_slice %127 {offsets = [0, 256], sizes = [8, 128], strides = [1, 1]} : vector<8x512xf32> to vector<8x128xf32>
    %141 = math.tanh %140 : vector<8x128xf32>
    %142 = vector.extract_strided_slice %127 {offsets = [0, 384], sizes = [8, 128], strides = [1, 1]} : vector<8x512xf32> to vector<8x128xf32>
    %143 = arith.negf %142 : vector<8x128xf32>
    %144 = math.exp %143 : vector<8x128xf32>
    %cst_31 = arith.constant 1.000000e+00 : f32
    %145 = vector.broadcast %cst_31 : f32 to vector<8x128xf32>
    %146 = arith.addf %145, %144 : vector<8x128xf32>
    %147 = arith.divf %145, %146 : vector<8x128xf32>
    %148 = arith.mulf %139, %120 : vector<8x128xf32>
    %149 = arith.mulf %133, %141 : vector<8x128xf32>
    %150 = arith.addf %148, %149 : vector<8x128xf32>
    %151 = math.tanh %150 : vector<8x128xf32>
    %152 = arith.mulf %147, %151 : vector<8x128xf32>
    %c5_i32 = arith.constant 5 : i32
    %153 = arith.index_cast %c5_i32 : i32 to index
    %c0_32 = arith.constant 0 : index
    %c0_33 = arith.constant 0 : index
    %154 = vector.load %arg0[%153, %c0_32, %c0_33] : memref<8x8x512xf32, #tpu.memory_space<vmem>>, vector<1x8x512xf32>
    %155 = vector.shape_cast %154 : vector<1x8x512xf32> to vector<8x512xf32>
    %cst_34 = arith.constant dense<0.000000e+00> : vector<8x512xf32>
    %156 = tpu.matmul %152, %0, %cst_34 {dimension_numbers = #tpu.dot_dimension_numbers<[1], [0], [0], [1], [0, 0, 1, 1], [], []>} : vector<8x128xf32>, vector<128x512xf32>, vector<8x512xf32> -> vector<8x512xf32>
    %157 = arith.addf %155, %156 : vector<8x512xf32>
    %158 = vector.extract_strided_slice %157 {offsets = [0, 0], sizes = [8, 128], strides = [1, 1]} : vector<8x512xf32> to vector<8x128xf32>
    %159 = arith.negf %158 : vector<8x128xf32>
    %160 = math.exp %159 : vector<8x128xf32>
    %cst_35 = arith.constant 1.000000e+00 : f32
    %161 = vector.broadcast %cst_35 : f32 to vector<8x128xf32>
    %162 = arith.addf %161, %160 : vector<8x128xf32>
    %163 = arith.divf %161, %162 : vector<8x128xf32>
    %164 = vector.extract_strided_slice %157 {offsets = [0, 128], sizes = [8, 128], strides = [1, 1]} : vector<8x512xf32> to vector<8x128xf32>
    %165 = arith.negf %164 : vector<8x128xf32>
    %166 = math.exp %165 : vector<8x128xf32>
    %cst_36 = arith.constant 1.000000e+00 : f32
    %167 = vector.broadcast %cst_36 : f32 to vector<8x128xf32>
    %168 = arith.addf %167, %166 : vector<8x128xf32>
    %169 = arith.divf %167, %168 : vector<8x128xf32>
    %170 = vector.extract_strided_slice %157 {offsets = [0, 256], sizes = [8, 128], strides = [1, 1]} : vector<8x512xf32> to vector<8x128xf32>
    %171 = math.tanh %170 : vector<8x128xf32>
    %172 = vector.extract_strided_slice %157 {offsets = [0, 384], sizes = [8, 128], strides = [1, 1]} : vector<8x512xf32> to vector<8x128xf32>
    %173 = arith.negf %172 : vector<8x128xf32>
    %174 = math.exp %173 : vector<8x128xf32>
    %cst_37 = arith.constant 1.000000e+00 : f32
    %175 = vector.broadcast %cst_37 : f32 to vector<8x128xf32>
    %176 = arith.addf %175, %174 : vector<8x128xf32>
    %177 = arith.divf %175, %176 : vector<8x128xf32>
    %178 = arith.mulf %169, %150 : vector<8x128xf32>
    %179 = arith.mulf %163, %171 : vector<8x128xf32>
    %180 = arith.addf %178, %179 : vector<8x128xf32>
    %181 = math.tanh %180 : vector<8x128xf32>
    %182 = arith.mulf %177, %181 : vector<8x128xf32>
    %c6_i32 = arith.constant 6 : i32
    %183 = arith.index_cast %c6_i32 : i32 to index
    %c0_38 = arith.constant 0 : index
    %c0_39 = arith.constant 0 : index
    %184 = vector.load %arg0[%183, %c0_38, %c0_39] : memref<8x8x512xf32, #tpu.memory_space<vmem>>, vector<1x8x512xf32>
    %185 = vector.shape_cast %184 : vector<1x8x512xf32> to vector<8x512xf32>
    %cst_40 = arith.constant dense<0.000000e+00> : vector<8x512xf32>
    %186 = tpu.matmul %182, %0, %cst_40 {dimension_numbers = #tpu.dot_dimension_numbers<[1], [0], [0], [1], [0, 0, 1, 1], [], []>} : vector<8x128xf32>, vector<128x512xf32>, vector<8x512xf32> -> vector<8x512xf32>
    %187 = arith.addf %185, %186 : vector<8x512xf32>
    %188 = vector.extract_strided_slice %187 {offsets = [0, 0], sizes = [8, 128], strides = [1, 1]} : vector<8x512xf32> to vector<8x128xf32>
    %189 = arith.negf %188 : vector<8x128xf32>
    %190 = math.exp %189 : vector<8x128xf32>
    %cst_41 = arith.constant 1.000000e+00 : f32
    %191 = vector.broadcast %cst_41 : f32 to vector<8x128xf32>
    %192 = arith.addf %191, %190 : vector<8x128xf32>
    %193 = arith.divf %191, %192 : vector<8x128xf32>
    %194 = vector.extract_strided_slice %187 {offsets = [0, 128], sizes = [8, 128], strides = [1, 1]} : vector<8x512xf32> to vector<8x128xf32>
    %195 = arith.negf %194 : vector<8x128xf32>
    %196 = math.exp %195 : vector<8x128xf32>
    %cst_42 = arith.constant 1.000000e+00 : f32
    %197 = vector.broadcast %cst_42 : f32 to vector<8x128xf32>
    %198 = arith.addf %197, %196 : vector<8x128xf32>
    %199 = arith.divf %197, %198 : vector<8x128xf32>
    %200 = vector.extract_strided_slice %187 {offsets = [0, 256], sizes = [8, 128], strides = [1, 1]} : vector<8x512xf32> to vector<8x128xf32>
    %201 = math.tanh %200 : vector<8x128xf32>
    %202 = vector.extract_strided_slice %187 {offsets = [0, 384], sizes = [8, 128], strides = [1, 1]} : vector<8x512xf32> to vector<8x128xf32>
    %203 = arith.negf %202 : vector<8x128xf32>
    %204 = math.exp %203 : vector<8x128xf32>
    %cst_43 = arith.constant 1.000000e+00 : f32
    %205 = vector.broadcast %cst_43 : f32 to vector<8x128xf32>
    %206 = arith.addf %205, %204 : vector<8x128xf32>
    %207 = arith.divf %205, %206 : vector<8x128xf32>
    %208 = arith.mulf %199, %180 : vector<8x128xf32>
    %209 = arith.mulf %193, %201 : vector<8x128xf32>
    %210 = arith.addf %208, %209 : vector<8x128xf32>
    %211 = math.tanh %210 : vector<8x128xf32>
    %212 = arith.mulf %207, %211 : vector<8x128xf32>
    %c7_i32 = arith.constant 7 : i32
    %213 = arith.index_cast %c7_i32 : i32 to index
    %c0_44 = arith.constant 0 : index
    %c0_45 = arith.constant 0 : index
    %214 = vector.load %arg0[%213, %c0_44, %c0_45] : memref<8x8x512xf32, #tpu.memory_space<vmem>>, vector<1x8x512xf32>
    %215 = vector.shape_cast %214 : vector<1x8x512xf32> to vector<8x512xf32>
    %cst_46 = arith.constant dense<0.000000e+00> : vector<8x512xf32>
    %216 = tpu.matmul %212, %0, %cst_46 {dimension_numbers = #tpu.dot_dimension_numbers<[1], [0], [0], [1], [0, 0, 1, 1], [], []>} : vector<8x128xf32>, vector<128x512xf32>, vector<8x512xf32> -> vector<8x512xf32>
    %217 = arith.addf %215, %216 : vector<8x512xf32>
    %218 = vector.extract_strided_slice %217 {offsets = [0, 0], sizes = [8, 128], strides = [1, 1]} : vector<8x512xf32> to vector<8x128xf32>
    %219 = arith.negf %218 : vector<8x128xf32>
    %220 = math.exp %219 : vector<8x128xf32>
    %cst_47 = arith.constant 1.000000e+00 : f32
    %221 = vector.broadcast %cst_47 : f32 to vector<8x128xf32>
    %222 = arith.addf %221, %220 : vector<8x128xf32>
    %223 = arith.divf %221, %222 : vector<8x128xf32>
    %224 = vector.extract_strided_slice %217 {offsets = [0, 128], sizes = [8, 128], strides = [1, 1]} : vector<8x512xf32> to vector<8x128xf32>
    %225 = arith.negf %224 : vector<8x128xf32>
    %226 = math.exp %225 : vector<8x128xf32>
    %cst_48 = arith.constant 1.000000e+00 : f32
    %227 = vector.broadcast %cst_48 : f32 to vector<8x128xf32>
    %228 = arith.addf %227, %226 : vector<8x128xf32>
    %229 = arith.divf %227, %228 : vector<8x128xf32>
    %230 = vector.extract_strided_slice %217 {offsets = [0, 256], sizes = [8, 128], strides = [1, 1]} : vector<8x512xf32> to vector<8x128xf32>
    %231 = math.tanh %230 : vector<8x128xf32>
    %232 = vector.extract_strided_slice %217 {offsets = [0, 384], sizes = [8, 128], strides = [1, 1]} : vector<8x512xf32> to vector<8x128xf32>
    %233 = arith.negf %232 : vector<8x128xf32>
    %234 = math.exp %233 : vector<8x128xf32>
    %cst_49 = arith.constant 1.000000e+00 : f32
    %235 = vector.broadcast %cst_49 : f32 to vector<8x128xf32>
    %236 = arith.addf %235, %234 : vector<8x128xf32>
    %237 = arith.divf %235, %236 : vector<8x128xf32>
    %238 = arith.mulf %229, %210 : vector<8x128xf32>
    %239 = arith.mulf %223, %231 : vector<8x128xf32>
    %240 = arith.addf %238, %239 : vector<8x128xf32>
    %241 = math.tanh %240 : vector<8x128xf32>
    %242 = arith.mulf %237, %241 : vector<8x128xf32>
    %c8_i32 = arith.constant 8 : i32
    %c0_50 = arith.constant 0 : index
    %c0_51 = arith.constant 0 : index
    %243 = vector.load %arg2[%c0_50, %c0_51] : memref<128x128xf32, #tpu.memory_space<vmem>>, vector<128x128xf32>
    %cst_52 = arith.constant dense<0.000000e+00> : vector<8x128xf32>
    %244 = tpu.matmul %242, %243, %cst_52 {dimension_numbers = #tpu.dot_dimension_numbers<[1], [0], [0], [1], [0, 0, 1, 1], [], []>} : vector<8x128xf32>, vector<128x128xf32>, vector<8x128xf32> -> vector<8x128xf32>
    %c0_53 = arith.constant 0 : index
    %c0_54 = arith.constant 0 : index
    %245 = vector.load %arg3[%c0_53, %c0_54] : memref<1x128xf32, #tpu.memory_space<vmem>>, vector<1x128xf32>
    %246 = vector.broadcast %245 : vector<1x128xf32> to vector<8x128xf32>
    %247 = arith.addf %244, %246 : vector<8x128xf32>
    %c0_55 = arith.constant 0 : index
    %c0_56 = arith.constant 0 : index
    %248 = vector.load %arg4[%c0_55, %c0_56] : memref<8x128xf32, #tpu.memory_space<vmem>>, vector<8x128xf32>
    tpu.vector_store %arg4[%c0_55, %c0_56], %247 {strides = array<i32>} : memref<8x128xf32, #tpu.memory_space<vmem>>, vector<8x128xf32>,
    return
  }
}

</mosaic_0001>

<llo_original>
// kernel: tpu_custom_call.1
$region0: #{tpu_custom_call.1}
  #allocation0 [shape = 'u32[]', space=smem, size = 0x4, offset = 0x4, fixed_abs, tag = 'smem constant byte address 0x4 - core index']
  #allocation1 [shape = 'u32[144,128]{1,0:T(1,128)}', space=vmem, size = 0x12000, scoped, tag = 'internal scratch']
  %s0 = inlined_call_operand.hbm [shape: f32[8,8,512], index: 0, kind: input, shape index: {}]
  %s1 = inlined_call_operand.hbm [shape: f32[128,512], index: 1, kind: input, shape index: {}]
  %s2 = inlined_call_operand.hbm [shape: f32[128,128], index: 2, kind: input, shape index: {}]
  %s3 = inlined_call_operand.vmem [shape: f32[1,128], index: 3, kind: input, shape index: {}]
  %s4 = inlined_call_operand.hbm [shape: f32[8,128], index: 4, kind: output, shape index: {}]
  %s5 = sld [smem:[#allocation0]]
  $region38: #{tpu_custom_call.1} parent=0
    _
  %s7 = ssub.s32 1, %s5
  %s8 = scalar_select 0, %s7, %s5
  $region1: #{tpu_custom_call.1} parent=0
    #allocation2 [shape = 'u8[131072]{0}', space=vmem, size = 0x20000, scoped, tag = 'input window, operand 0, single buffered']
    #allocation3 [shape = 's32[1]{0}', space=sflag, size = 0x4, scoped, tag = 'scoped memory for tpu_custom_call.1']
    #allocation4 [shape = 's32[1]{0}', space=sflag, size = 0x4, scoped, tag = 'scoped memory for tpu_custom_call.1']
    #allocation5 [shape = 'u8[262144]{0}', space=vmem, size = 0x40000, scoped, tag = 'input window, operand 1, single buffered']
    #allocation6 [shape = 's32[1]{0}', space=sflag, size = 0x4, scoped, tag = 'scoped memory for tpu_custom_call.1']
    #allocation7 [shape = 'u8[65536]{0}', space=vmem, size = 0x10000, scoped, tag = 'input window, operand 2, single buffered']
    #allocation8 [shape = 'u8[4096]{0}', space=vmem, size = 0x1000, scoped, tag = 'output window, operand 0, single buffered']
    %9 = vsyncpa [#allocation3], 0
    %10 = vsyncpa [#allocation6], 0
    %11 = vsyncpa [#allocation4], 0
    // Predicated region
    $region2: #{tpu_custom_call.1} parent=1 // pred_check
      _
    $region3: #{tpu_custom_call.1} parent=1 // pred_check_branch
      %13 = sbr.rel (0) target = $region5
    $region4: #{tpu_custom_call.1} parent=1 // pred_region
      %s15 = ssub.s32 4096, 4096
      %16 = vsyncadd [#allocation3], %s15
      %s17 = sshll.u32 [#allocation2], 4
      %s18 = int_to_ptr.vmem [resolvable:$true] %s17
      %23 = dma.hbm_to_vmem [thread:$0]  %s0, 4096, %s18, [#allocation3], 512, 512, 32
    $region5: #{tpu_custom_call.1} parent=1 // pred_fallthru
      _
    // Predicated region
    $region6: #{tpu_custom_call.1} parent=1 // pred_check
      _
    $region7: #{tpu_custom_call.1} parent=1 // pred_check_branch
      %25 = sbr.rel (0) target = $region9
    $region8: #{tpu_custom_call.1} parent=1 // pred_region
      %s27 = ssub.s32 8192, 8192
      %28 = vsyncadd [#allocation6], %s27
      %s29 = sshll.u32 [#allocation5], 4
      %s30 = int_to_ptr.vmem [resolvable:$true] %s29
      %35 = dma.hbm_to_vmem [thread:$0]  %s1, 8192, %s30, [#allocation6], 512, 512, 32
    $region9: #{tpu_custom_call.1} parent=1 // pred_fallthru
      _
    // Predicated region
    $region10: #{tpu_custom_call.1} parent=1 // pred_check
      _
    $region11: #{tpu_custom_call.1} parent=1 // pred_check_branch
      %37 = sbr.rel (0) target = $region13
    $region12: #{tpu_custom_call.1} parent=1 // pred_region
      %s39 = ssub.s32 2048, 2048
      %40 = vsyncadd [#allocation6], %s39
      %s41 = sshll.u32 [#allocation7], 4
      %s42 = int_to_ptr.vmem [resolvable:$true] %s41
      %47 = dma.hbm_to_vmem [thread:$0]  %s2, 2048, %s42, [#allocation6], 128, 128, 8
    $region13: #{tpu_custom_call.1} parent=1 // pred_fallthru
      _
    // Predicated region
    $region14: #{tpu_custom_call.1} parent=1 // pred_check
      _
    $region15: #{tpu_custom_call.1} parent=1 // pred_check_branch
      %49 = sbr.rel (0) target = $region17
    $region16: #{tpu_custom_call.1} parent=1 // pred_region
      _
    $region17: #{tpu_custom_call.1} parent=1 // pred_fallthru
      _
    // Predicated region
    $region18: #{tpu_custom_call.1} parent=1 // pred_check
      _
    $region19: #{tpu_custom_call.1} parent=1 // pred_check_branch
      %51 = sbr.rel (0) target = $region21
    $region20: #{tpu_custom_call.1} parent=1 // pred_region
      %52 = dma.done [#allocation3], 4096
    $region21: #{tpu_custom_call.1} parent=1 // pred_fallthru
      _
    // Predicated region
    $region22: #{tpu_custom_call.1} parent=1 // pred_check
      _
    $region23: #{tpu_custom_call.1} parent=1 // pred_check_branch
      %54 = sbr.rel (0) target = $region25
    $region24: #{tpu_custom_call.1} parent=1 // pred_region
      %55 = dma.done [#allocation6], 8192
    $region25: #{tpu_custom_call.1} parent=1 // pred_fallthru
      _
    // Predicated region
    $region26: #{tpu_custom_call.1} parent=1 // pred_check
      _
    $region27: #{tpu_custom_call.1} parent=1 // pred_check_branch
      %57 = sbr.rel (0) target = $region29
    $region28: #{tpu_custom_call.1} parent=1 // pred_region
      %58 = dma.done [#allocation6], 2048
    $region29: #{tpu_custom_call.1} parent=1 // pred_fallthru
      _
    %v59 = vld [vmem:[#allocation5] sm:$0xff]
    %v60 = vld [vmem:[#allocation5 + $0x8] sm:$0xff]
    %v61 = vld [vmem:[#allocation5 + $0x10] sm:$0xff]
    %v62 = vld [vmem:[#allocation5 + $0x18] sm:$0xff]
    %v63 = vld [vmem:[#allocation5 + $0x20] sm:$0xff]
    %v64 = vld [vmem:[#allocation5 + $0x28] sm:$0xff]
    %v65 = vld [vmem:[#allocation5 + $0x30] sm:$0xff]
    %v66 = vld [vmem:[#allocation5 + $0x38] sm:$0xff]
    %v67 = vld [vmem:[#allocation5 + $0x40] sm:$0xff]
    %v68 = vld [vmem:[#allocation5 + $0x48] sm:$0xff]
    %v69 = vld [vmem:[#allocation5 + $0x50] sm:$0xff]
    %v70 = vld [vmem:[#allocation5 + $0x58] sm:$0xff]
    %v71 = vld [vmem:[#allocation5 + $0x60] sm:$0xff]
    %v72 = vld [vmem:[#allocation5 + $0x68] sm:$0xff]
    %v73 = vld [vmem:[#allocation5 + $0x70] sm:$0xff]
    %v74 = vld [vmem:[#allocation5 + $0x78] sm:$0xff]
    %v75 = vld [vmem:[#allocation5 + $0x80] sm:$0xff]
    %v76 = vld [vmem:[#allocation5 + $0x88] sm:$0xff]
    %v77 = vld [vmem:[#allocation5 + $0x90] sm:$0xff]
    %v78 = vld [vmem:[#allocation5 + $0x98] sm:$0xff]
    %v79 = vld [vmem:[#allocation5 + $0xa0] sm:$0xff]
    %v80 = vld [vmem:[#allocation5 + $0xa8] sm:$0xff]
    %v81 = vld [vmem:[#allocation5 + $0xb0] sm:$0xff]
    %v82 = vld [vmem:[#allocation5 + $0xb8] sm:$0xff]
    %v83 = vld [vmem:[#allocation5 + $0xc0] sm:$0xff]
    %v84 = vld [vmem:[#allocation5 + $0xc8] sm:$0xff]
    %v85 = vld [vmem:[#allocation5 + $0xd0] sm:$0xff]
    %v86 = vld [vmem:[#allocation5 + $0xd8] sm:$0xff]
    %v87 = vld [vmem:[#allocation5 + $0xe0] sm:$0xff]
    %v88 = vld [vmem:[#allocation5 + $0xe8] sm:$0xff]
    %v89 = vld [vmem:[#allocation5 + $0xf0] sm:$0xff]
    %v90 = vld [vmem:[#allocation5 + $0xf8] sm:$0xff]
    %v91 = vld [vmem:[#allocation5 + $0x100] sm:$0xff]
    %v92 = vld [vmem:[#allocation5 + $0x108] sm:$0xff]
    %v93 = vld [vmem:[#allocation5 + $0x110] sm:$0xff]
    %v94 = vld [vmem:[#allocation5 + $0x118] sm:$0xff]
    %v95 = vld [vmem:[#allocation5 + $0x120] sm:$0xff]
    %v96 = vld [vmem:[#allocation5 + $0x128] sm:$0xff]
    %v97 = vld [vmem:[#allocation5 + $0x130] sm:$0xff]
    %v98 = vld [vmem:[#allocation5 + $0x138] sm:$0xff]
    %v99 = vld [vmem:[#allocation5 + $0x140] sm:$0xff]
    %v100 = vld [vmem:[#allocation5 + $0x148] sm:$0xff]
    %v101 = vld [vmem:[#allocation5 + $0x150] sm:$0xff]
    %v102 = vld [vmem:[#allocation5 + $0x158] sm:$0xff]
    %v103 = vld [vmem:[#allocation5 + $0x160] sm:$0xff]
    %v104 = vld [vmem:[#allocation5 + $0x168] sm:$0xff]
    %v105 = vld [vmem:[#allocation5 + $0x170] sm:$0xff]
    %v106 = vld [vmem:[#allocation5 + $0x178] sm:$0xff]
    %v107 = vld [vmem:[#allocation5 + $0x180] sm:$0xff]
    %v108 = vld [vmem:[#allocation5 + $0x188] sm:$0xff]
    %v109 = vld [vmem:[#allocation5 + $0x190] sm:$0xff]
    %v110 = vld [vmem:[#allocation5 + $0x198] sm:$0xff]
    %v111 = vld [vmem:[#allocation5 + $0x1a0] sm:$0xff]
    %v112 = vld [vmem:[#allocation5 + $0x1a8] sm:$0xff]
    %v113 = vld [vmem:[#allocation5 + $0x1b0] sm:$0xff]
    %v114 = vld [vmem:[#allocation5 + $0x1b8] sm:$0xff]
    %v115 = vld [vmem:[#allocation5 + $0x1c0] sm:$0xff]
    %v116 = vld [vmem:[#allocation5 + $0x1c8] sm:$0xff]
    %v117 = vld [vmem:[#allocation5 + $0x1d0] sm:$0xff]
    %v118 = vld [vmem:[#allocation5 + $0x1d8] sm:$0xff]
    %v119 = vld [vmem:[#allocation5 + $0x1e0] sm:$0xff]
    %v120 = vld [vmem:[#allocation5 + $0x1e8] sm:$0xff]
    %v121 = vld [vmem:[#allocation5 + $0x1f0] sm:$0xff]
    %v122 = vld [vmem:[#allocation5 + $0x1f8] sm:$0xff]
    %v123 = vld [vmem:[#allocation2] sm:$0xff]
    %v124 = vld [vmem:[#allocation2 + $0x8] sm:$0xff]
    %v125 = vld [vmem:[#allocation2 + $0x10] sm:$0xff]
    %v126 = vld [vmem:[#allocation2 + $0x18] sm:$0xff]
    %127 = vmatprep.subr.mxu0 %v60
    %128 = vmatpush1.msra.mxu0 %v59
    %129 = vmatprep.subr.mxu0 %v64
    %130 = vmatpush1.msra.mxu0 %v63
    %131 = vmatprep.subr.mxu0 %v68
    %132 = vmatpush1.msra.mxu0 %v67
    %133 = vmatprep.subr.mxu0 %v72
    %134 = vmatpush1.msra.mxu0 %v71
    %135 = vmatprep.subr.mxu0 %v76
    %136 = vmatpush1.msra.mxu0 %v75
    %137 = vmatprep.subr.mxu0 %v80
    %138 = vmatpush1.msra.mxu0 %v79
    %139 = vmatprep.subr.mxu0 %v84
    %140 = vmatpush1.msra.mxu0 %v83
    %141 = vmatprep.subr.mxu0 %v88
    %142 = vmatpush1.msra.mxu0 %v87
    %143 = vmatprep.subr.mxu0 %v92
    %144 = vmatpush1.msra.mxu0 %v91
    %145 = vmatprep.subr.mxu0 %v96
    %146 = vmatpush1.msra.mxu0 %v95
    %147 = vmatprep.subr.mxu0 %v100
    %148 = vmatpush1.msra.mxu0 %v99
    %149 = vmatprep.subr.mxu0 %v104
    %150 = vmatpush1.msra.mxu0 %v103
    %151 = vmatprep.subr.mxu0 %v108
    %152 = vmatpush1.msra.mxu0 %v107
    %153 = vmatprep.subr.mxu0 %v112
    %154 = vmatpush1.msra.mxu0 %v111
    %155 = vmatprep.subr.mxu0 %v116
    %156 = vmatpush1.msra.mxu0 %v115
    %157 = vmatprep.subr.mxu0 %v120
    %158 = vmatpush1.msra.mxu0 %v119
    %159 = vmatprep.subr.mxu0 0.0
    %160 = vmatpush1.msra.mxu0 0.0
    %161 = vmatprep.subr.mxu0 0.0
    %162 = vmatpush1.msra.mxu0 0.0
    %163 = vmatprep.subr.mxu0 0.0
    %164 = vmatpush1.msra.mxu0 0.0
    %165 = vmatprep.subr.mxu0 0.0
    %166 = vmatpush1.msra.mxu0 0.0
    %167 = vmatprep.subr.mxu0 0.0
    %168 = vmatpush1.msra.mxu0 0.0
    %169 = vmatprep.subr.mxu0 0.0
    %170 = vmatpush1.msra.mxu0 0.0
    %171 = vmatprep.subr.mxu0 0.0
    %172 = vmatpush1.msra.mxu0 0.0
    %173 = vmatprep.subr.mxu0 0.0
    %174 = vmatpush1.msra.mxu0 0.0
    %175 = vmatprep.subr.mxu0 0.0
    %176 = vmatpush1.msra.mxu0 0.0
    %177 = vmatprep.subr.mxu0 0.0
    %178 = vmatpush1.msra.mxu0 0.0
    %179 = vmatprep.subr.mxu0 0.0
    %180 = vmatpush1.msra.mxu0 0.0
    %181 = vmatprep.subr.mxu0 0.0
    %182 = vmatpush1.msra.mxu0 0.0
    %183 = vmatprep.subr.mxu0 0.0
    %184 = vmatpush1.msra.mxu0 0.0
    %185 = vmatprep.subr.mxu0 0.0
    %186 = vmatpush1.msra.mxu0 0.0
    %187 = vmatprep.subr.mxu0 0.0
    %188 = vmatpush1.msra.mxu0 0.0
    %189 = vmatprep.subr.mxu0 0.0
    %190 = vmatpush1.msra.mxu0 0.0
    %191 = vmatprep.mubr.f32.mxu0 0.0
    %192 = vmatmul.mubr.f32.gmra.mrb[0].mxu0 0.0
    %v193 = vpop.f32.mrb[0].mxu0
    %v194 = vadd.f32 0.0, %v193
    %v195 = vpop.f32.mrb[0].mxu0
    %v196 = vadd.f32 0.0, %v195
    %197 = vdwg.mxu0
    %198 = vmatprep.subr.mxu0 %v62
    %199 = vmatpush1.msra.mxu0 %v61
    %200 = vmatprep.subr.mxu0 %v66
    %201 = vmatpush1.msra.mxu0 %v65
    %202 = vmatprep.subr.mxu0 %v70
    %203 = vmatpush1.msra.mxu0 %v69
    %204 = vmatprep.subr.mxu0 %v74
    %205 = vmatpush1.msra.mxu0 %v73
    %206 = vmatprep.subr.mxu0 %v78
    %207 = vmatpush1.msra.mxu0 %v77
    %208 = vmatprep.subr.mxu0 %v82
    %209 = vmatpush1.msra.mxu0 %v81
    %210 = vmatprep.subr.mxu0 %v86
    %211 = vmatpush1.msra.mxu0 %v85
    %212 = vmatprep.subr.mxu0 %v90
    %213 = vmatpush1.msra.mxu0 %v89
    %214 = vmatprep.subr.mxu0 %v94
    %215 = vmatpush1.msra.mxu0 %v93
    %216 = vmatprep.subr.mxu0 %v98
    %217 = vmatpush1.msra.mxu0 %v97
    %218 = vmatprep.subr.mxu0 %v102
    %219 = vmatpush1.msra.mxu0 %v101
    %220 = vmatprep.subr.mxu0 %v106
    %221 = vmatpush1.msra.mxu0 %v105
    %222 = vmatprep.subr.mxu0 %v110
    %223 = vmatpush1.msra.mxu0 %v109
    %224 = vmatprep.subr.mxu0 %v114
    %225 = vmatpush1.msra.mxu0 %v113
    %226 = vmatprep.subr.mxu0 %v118
    %227 = vmatpush1.msra.mxu0 %v117
    %228 = vmatprep.subr.mxu0 %v122
    %229 = vmatpush1.msra.mxu0 %v121
    %230 = vmatprep.subr.mxu0 0.0
    %231 = vmatpush1.msra.mxu0 0.0
    %232 = vmatprep.subr.mxu0 0.0
    %233 = vmatpush1.msra.mxu0 0.0
    %234 = vmatprep.subr.mxu0 0.0
    %235 = vmatpush1.msra.mxu0 0.0
    %236 = vmatprep.subr.mxu0 0.0
    %237 = vmatpush1.msra.mxu0 0.0
    %238 = vmatprep.subr.mxu0 0.0
    %239 = vmatpush1.msra.mxu0 0.0
    %240 = vmatprep.subr.mxu0 0.0
    %241 = vmatpush1.msra.mxu0 0.0
    %242 = vmatprep.subr.mxu0 0.0
    %243 = vmatpush1.msra.mxu0 0.0
    %244 = vmatprep.subr.mxu0 0.0
    %245 = vmatpush1.msra.mxu0 0.0
    %246 = vmatprep.subr.mxu0 0.0
    %247 = vmatpush1.msra.mxu0 0.0
    %248 = vmatprep.subr.mxu0 0.0
    %249 = vmatpush1.msra.mxu0 0.0
    %250 = vmatprep.subr.mxu0 0.0
    %251 = vmatpush1.msra.mxu0 0.0
    %252 = vmatprep.subr.mxu0 0.0
    %253 = vmatpush1.msra.mxu0 0.0
    %254 = vmatprep.subr.mxu0 0.0
    %255 = vmatpush1.msra.mxu0 0.0
    %256 = vmatprep.subr.mxu0 0.0
    %257 = vmatpush1.msra.mxu0 0.0
    %258 = vmatprep.subr.mxu0 0.0
    %259 = vmatpush1.msra.mxu0 0.0
    %260 = vmatprep.subr.mxu0 0.0
    %261 = vmatpush1.msra.mxu0 0.0
    %262 = vmatprep.mubr.f32.mxu0 0.0
    %263 = vmatmul.mubr.f32.gmra.mrb[0].mxu0 0.0
    %v264 = vpop.f32.mrb[0].mxu0
    %v265 = vadd.f32 0.0, %v264
    %v266 = vpop.f32.mrb[0].mxu0
    %v267 = vadd.f32 0.0, %v266
    %268 = vdwg.mxu0
    %v269 = vadd.f32 %v123, %v194
    %v270 = vadd.f32 %v124, %v196
    %v271 = vadd.f32 %v125, %v265
    %v272 = vadd.f32 %v126, %v267
    %v273 = vxor.u32 %v269, 2147483648
    %v274 = vmul.f32 %v273, 1.442695
    %v275 = vpow.pop %v274
    %v276 = vadd.f32 %v275, 1.0
    %v277 = vrcp.pop %v276
    %v278 = vmul.f32 1.0, %v277
    %v279 = vxor.u32 %v270, 2147483648
    %v280 = vmul.f32 %v279, 1.442695
    %v281 = vpow.pop %v280
    %v282 = vadd.f32 %v281, 1.0
    %v283 = vrcp.pop %v282
    %v284 = vmul.f32 1.0, %v283
    %v285 = vtanh.pop %v271
    %v286 = vxor.u32 %v272, 2147483648
    %v287 = vmul.f32 %v286, 1.442695
    %v288 = vpow.pop %v287
    %v289 = vadd.f32 %v288, 1.0
    %v290 = vrcp.pop %v289
    %v291 = vmul.f32 1.0, %v290
    %v292 = vmul.f32 %v284, 0.0
    %v293 = vmul.f32 %v278, %v285
    %v294 = vadd.f32 %v292, %v293
    %v295 = vtanh.pop %v294
    %v296 = vmul.f32 %v291, %v295
    %s297 = scalar_lea.vmem [#allocation2], 32
    %v298 = vld [vmem:[%s297] sm:$0xff]
    %v299 = vld [vmem:[%s297 + $0x8] sm:$0xff]
    %v300 = vld [vmem:[%s297 + $0x10] sm:$0xff]
    %v301 = vld [vmem:[%s297 + $0x18] sm:$0xff]
    %302 = vmatprep.subr.mxu0 %v60
    %303 = vmatpush1.msra.mxu0 %v59
    %304 = vmatprep.subr.mxu0 %v64
    %305 = vmatpush1.msra.mxu0 %v63
    %306 = vmatprep.subr.mxu0 %v68
    %307 = vmatpush1.msra.mxu0 %v67
    %308 = vmatprep.subr.mxu0 %v72
    %309 = vmatpush1.msra.mxu0 %v71
    %310 = vmatprep.subr.mxu0 %v76
    %311 = vmatpush1.msra.mxu0 %v75
    %312 = vmatprep.subr.mxu0 %v80
    %313 = vmatpush1.msra.mxu0 %v79
    %314 = vmatprep.subr.mxu0 %v84
    %315 = vmatpush1.msra.mxu0 %v83
    %316 = vmatprep.subr.mxu0 %v88
    %317 = vmatpush1.msra.mxu0 %v87
    %318 = vmatprep.subr.mxu0 %v92
    %319 = vmatpush1.msra.mxu0 %v91
    %320 = vmatprep.subr.mxu0 %v96
    %321 = vmatpush1.msra.mxu0 %v95
    %322 = vmatprep.subr.mxu0 %v100
    %323 = vmatpush1.msra.mxu0 %v99
    %324 = vmatprep.subr.mxu0 %v104
    %325 = vmatpush1.msra.mxu0 %v103
    %326 = vmatprep.subr.mxu0 %v108
    %327 = vmatpush1.msra.mxu0 %v107
    %328 = vmatprep.subr.mxu0 %v112
    %329 = vmatpush1.msra.mxu0 %v111
    %330 = vmatprep.subr.mxu0 %v116
    %331 = vmatpush1.msra.mxu0 %v115
    %332 = vmatprep.subr.mxu0 %v120
    %333 = vmatpush1.msra.mxu0 %v119
    %334 = vmatprep.subr.mxu0 0.0
    %335 = vmatpush1.msra.mxu0 0.0
    %336 = vmatprep.subr.mxu0 0.0
    %337 = vmatpush1.msra.mxu0 0.0
    %338 = vmatprep.subr.mxu0 0.0
    %339 = vmatpush1.msra.mxu0 0.0
    %340 = vmatprep.subr.mxu0 0.0
    %341 = vmatpush1.msra.mxu0 0.0
    %342 = vmatprep.subr.mxu0 0.0
    %343 = vmatpush1.msra.mxu0 0.0
    %344 = vmatprep.subr.mxu0 0.0
    %345 = vmatpush1.msra.mxu0 0.0
    %346 = vmatprep.subr.mxu0 0.0
    %347 = vmatpush1.msra.mxu0 0.0
    %348 = vmatprep.subr.mxu0 0.0
    %349 = vmatpush1.msra.mxu0 0.0
    %350 = vmatprep.subr.mxu0 0.0
    %351 = vmatpush1.msra.mxu0 0.0
    %352 = vmatprep.subr.mxu0 0.0
    %353 = vmatpush1.msra.mxu0 0.0
    %354 = vmatprep.subr.mxu0 0.0
    %355 = vmatpush1.msra.mxu0 0.0
    %356 = vmatprep.subr.mxu0 0.0
    %357 = vmatpush1.msra.mxu0 0.0
    %358 = vmatprep.subr.mxu0 0.0
    %359 = vmatpush1.msra.mxu0 0.0
    %360 = vmatprep.subr.mxu0 0.0
    %361 = vmatpush1.msra.mxu0 0.0
    %362 = vmatprep.subr.mxu0 0.0
    %363 = vmatpush1.msra.mxu0 0.0
    %364 = vmatprep.subr.mxu0 0.0
    %365 = vmatpush1.msra.mxu0 0.0
    %366 = vmatprep.mubr.f32.mxu0 0.0
    %367 = vmatmul.mubr.f32.gmra.mrb[0].mxu0 %v296
    %v368 = vpop.f32.mrb[0].mxu0
    %v369 = vadd.f32 0.0, %v368
    %v370 = vpop.f32.mrb[0].mxu0
    %v371 = vadd.f32 0.0, %v370
    %372 = vdwg.mxu0
    %373 = vmatprep.subr.mxu0 %v62
    %374 = vmatpush1.msra.mxu0 %v61
    %375 = vmatprep.subr.mxu0 %v66
    %376 = vmatpush1.msra.mxu0 %v65
    %377 = vmatprep.subr.mxu0 %v70
    %378 = vmatpush1.msra.mxu0 %v69
    %379 = vmatprep.subr.mxu0 %v74
    %380 = vmatpush1.msra.mxu0 %v73
    %381 = vmatprep.subr.mxu0 %v78
    %382 = vmatpush1.msra.mxu0 %v77
    %383 = vmatprep.subr.mxu0 %v82
    %384 = vmatpush1.msra.mxu0 %v81
    %385 = vmatprep.subr.mxu0 %v86
    %386 = vmatpush1.msra.mxu0 %v85
    %387 = vmatprep.subr.mxu0 %v90
    %388 = vmatpush1.msra.mxu0 %v89
    %389 = vmatprep.subr.mxu0 %v94
    %390 = vmatpush1.msra.mxu0 %v93
    %391 = vmatprep.subr.mxu0 %v98
    %392 = vmatpush1.msra.mxu0 %v97
    %393 = vmatprep.subr.mxu0 %v102
    %394 = vmatpush1.msra.mxu0 %v101
    %395 = vmatprep.subr.mxu0 %v106
    %396 = vmatpush1.msra.mxu0 %v105
    %397 = vmatprep.subr.mxu0 %v110
    %398 = vmatpush1.msra.mxu0 %v109
    %399 = vmatprep.subr.mxu0 %v114
    %400 = vmatpush1.msra.mxu0 %v113
    %401 = vmatprep.subr.mxu0 %v118
    %402 = vmatpush1.msra.mxu0 %v117
    %403 = vmatprep.subr.mxu0 %v122
    %404 = vmatpush1.msra.mxu0 %v121
    %405 = vmatprep.subr.mxu0 0.0
    %406 = vmatpush1.msra.mxu0 0.0
    %407 = vmatprep.subr.mxu0 0.0
    %408 = vmatpush1.msra.mxu0 0.0
    %409 = vmatprep.subr.mxu0 0.0
    %410 = vmatpush1.msra.mxu0 0.0
    %411 = vmatprep.subr.mxu0 0.0
    %412 = vmatpush1.msra.mxu0 0.0
    %413 = vmatprep.subr.mxu0 0.0
    %414 = vmatpush1.msra.mxu0 0.0
    %415 = vmatprep.subr.mxu0 0.0
    %416 = vmatpush1.msra.mxu0 0.0
    %417 = vmatprep.subr.mxu0 0.0
    %418 = vmatpush1.msra.mxu0 0.0
    %419 = vmatprep.subr.mxu0 0.0
    %420 = vmatpush1.msra.mxu0 0.0
    %421 = vmatprep.subr.mxu0 0.0
    %422 = vmatpush1.msra.mxu0 0.0
    %423 = vmatprep.subr.mxu0 0.0
    %424 = vmatpush1.msra.mxu0 0.0
    %425 = vmatprep.subr.mxu0 0.0
    %426 = vmatpush1.msra.mxu0 0.0
    %427 = vmatprep.subr.mxu0 0.0
    %428 = vmatpush1.msra.mxu0 0.0
    %429 = vmatprep.subr.mxu0 0.0
    %430 = vmatpush1.msra.mxu0 0.0
    %431 = vmatprep.subr.mxu0 0.0
    %432 = vmatpush1.msra.mxu0 0.0
    %433 = vmatprep.subr.mxu0 0.0
    %434 = vmatpush1.msra.mxu0 0.0
    %435 = vmatprep.subr.mxu0 0.0
    %436 = vmatpush1.msra.mxu0 0.0
    %437 = vmatprep.mubr.f32.mxu0 0.0
    %438 = vmatmul.mubr.f32.gmra.mrb[0].mxu0 %v296
    %v439 = vpop.f32.mrb[0].mxu0
    %v440 = vadd.f32 0.0, %v439
    %v441 = vpop.f32.mrb[0].mxu0
    %v442 = vadd.f32 0.0, %v441
    %443 = vdwg.mxu0
    %v444 = vadd.f32 %v298, %v369
    %v445 = vadd.f32 %v299, %v371
    %v446 = vadd.f32 %v300, %v440
    %v447 = vadd.f32 %v301, %v442
    %v448 = vxor.u32 %v444, 2147483648
    %v449 = vmul.f32 %v448, 1.442695
    %v450 = vpow.pop %v449
    %v451 = vadd.f32 %v450, 1.0
    %v452 = vrcp.pop %v451
    %v453 = vmul.f32 1.0, %v452
    %v454 = vxor.u32 %v445, 2147483648
    %v455 = vmul.f32 %v454, 1.442695
    %v456 = vpow.pop %v455
    %v457 = vadd.f32 %v456, 1.0
    %v458 = vrcp.pop %v457
    %v459 = vmul.f32 1.0, %v458
    %v460 = vtanh.pop %v446
    %v461 = vxor.u32 %v447, 2147483648
    %v462 = vmul.f32 %v461, 1.442695
    %v463 = vpow.pop %v462
    %v464 = vadd.f32 %v463, 1.0
    %v465 = vrcp.pop %v464
    %v466 = vmul.f32 1.0, %v465
    %v467 = vmul.f32 %v459, %v294
    %v468 = vmul.f32 %v453, %v460
    %v469 = vadd.f32 %v467, %v468
    %v470 = vtanh.pop %v469
    %v471 = vmul.f32 %v466, %v470
    %s472 = scalar_lea.vmem [#allocation2], 64
    %v473 = vld [vmem:[%s472] sm:$0xff]
    %v474 = vld [vmem:[%s472 + $0x8] sm:$0xff]
    %v475 = vld [vmem:[%s472 + $0x10] sm:$0xff]
    %v476 = vld [vmem:[%s472 + $0x18] sm:$0xff]
    %477 = vmatprep.subr.mxu0 %v60
    %478 = vmatpush1.msra.mxu0 %v59
    %479 = vmatprep.subr.mxu0 %v64
    %480 = vmatpush1.msra.mxu0 %v63
    %481 = vmatprep.subr.mxu0 %v68
    %482 = vmatpush1.msra.mxu0 %v67
    %483 = vmatprep.subr.mxu0 %v72
    %484 = vmatpush1.msra.mxu0 %v71
    %485 = vmatprep.subr.mxu0 %v76
    %486 = vmatpush1.msra.mxu0 %v75
    %487 = vmatprep.subr.mxu0 %v80
    %488 = vmatpush1.msra.mxu0 %v79
    %489 = vmatprep.subr.mxu0 %v84
    %490 = vmatpush1.msra.mxu0 %v83
    %491 = vmatprep.subr.mxu0 %v88
    %492 = vmatpush1.msra.mxu0 %v87
    %493 = vmatprep.subr.mxu0 %v92
    %494 = vmatpush1.msra.mxu0 %v91
    %495 = vmatprep.subr.mxu0 %v96
    %496 = vmatpush1.msra.mxu0 %v95
    %497 = vmatprep.subr.mxu0 %v100
    %498 = vmatpush1.msra.mxu0 %v99
    %499 = vmatprep.subr.mxu0 %v104
    %500 = vmatpush1.msra.mxu0 %v103
    %501 = vmatprep.subr.mxu0 %v108
    %502 = vmatpush1.msra.mxu0 %v107
    %503 = vmatprep.subr.mxu0 %v112
    %504 = vmatpush1.msra.mxu0 %v111
    %505 = vmatprep.subr.mxu0 %v116
    %506 = vmatpush1.msra.mxu0 %v115
    %507 = vmatprep.subr.mxu0 %v120
    %508 = vmatpush1.msra.mxu0 %v119
    %509 = vmatprep.subr.mxu0 0.0
    %510 = vmatpush1.msra.mxu0 0.0
    %511 = vmatprep.subr.mxu0 0.0
    %512 = vmatpush1.msra.mxu0 0.0
    %513 = vmatprep.subr.mxu0 0.0
    %514 = vmatpush1.msra.mxu0 0.0
    %515 = vmatprep.subr.mxu0 0.0
    %516 = vmatpush1.msra.mxu0 0.0
    %517 = vmatprep.subr.mxu0 0.0
    %518 = vmatpush1.msra.mxu0 0.0
    %519 = vmatprep.subr.mxu0 0.0
    %520 = vmatpush1.msra.mxu0 0.0
    %521 = vmatprep.subr.mxu0 0.0
    %522 = vmatpush1.msra.mxu0 0.0
    %523 = vmatprep.subr.mxu0 0.0
    %524 = vmatpush1.msra.mxu0 0.0
    %525 = vmatprep.subr.mxu0 0.0
    %526 = vmatpush1.msra.mxu0 0.0
    %527 = vmatprep.subr.mxu0 0.0
    %528 = vmatpush1.msra.mxu0 0.0
    %529 = vmatprep.subr.mxu0 0.0
    %530 = vmatpush1.msra.mxu0 0.0
    %531 = vmatprep.subr.mxu0 0.0
    %532 = vmatpush1.msra.mxu0 0.0
    %533 = vmatprep.subr.mxu0 0.0
    %534 = vmatpush1.msra.mxu0 0.0
    %535 = vmatprep.subr.mxu0 0.0
    %536 = vmatpush1.msra.mxu0 0.0
    %537 = vmatprep.subr.mxu0 0.0
    %538 = vmatpush1.msra.mxu0 0.0
    %539 = vmatprep.subr.mxu0 0.0
    %540 = vmatpush1.msra.mxu0 0.0
    %541 = vmatprep.mubr.f32.mxu0 0.0
    %542 = vmatmul.mubr.f32.gmra.mrb[0].mxu0 %v471
    %v543 = vpop.f32.mrb[0].mxu0
    %v544 = vadd.f32 0.0, %v543
    %v545 = vpop.f32.mrb[0].mxu0
    %v546 = vadd.f32 0.0, %v545
    %547 = vdwg.mxu0
    %548 = vmatprep.subr.mxu0 %v62
    %549 = vmatpush1.msra.mxu0 %v61
    %550 = vmatprep.subr.mxu0 %v66
    %551 = vmatpush1.msra.mxu0 %v65
    %552 = vmatprep.subr.mxu0 %v70
    %553 = vmatpush1.msra.mxu0 %v69
    %554 = vmatprep.subr.mxu0 %v74
    %555 = vmatpush1.msra.mxu0 %v73
    %556 = vmatprep.subr.mxu0 %v78
    %557 = vmatpush1.msra.mxu0 %v77
    %558 = vmatprep.subr.mxu0 %v82
    %559 = vmatpush1.msra.mxu0 %v81
    %560 = vmatprep.subr.mxu0 %v86
    %561 = vmatpush1.msra.mxu0 %v85
    %562 = vmatprep.subr.mxu0 %v90
    %563 = vmatpush1.msra.mxu0 %v89
    %564 = vmatprep.subr.mxu0 %v94
    %565 = vmatpush1.msra.mxu0 %v93
    %566 = vmatprep.subr.mxu0 %v98
    %567 = vmatpush1.msra.mxu0 %v97
    %568 = vmatprep.subr.mxu0 %v102
    %569 = vmatpush1.msra.mxu0 %v101
    %570 = vmatprep.subr.mxu0 %v106
    %571 = vmatpush1.msra.mxu0 %v105
    %572 = vmatprep.subr.mxu0 %v110
    %573 = vmatpush1.msra.mxu0 %v109
    %574 = vmatprep.subr.mxu0 %v114
    %575 = vmatpush1.msra.mxu0 %v113
    %576 = vmatprep.subr.mxu0 %v118
    %577 = vmatpush1.msra.mxu0 %v117
    %578 = vmatprep.subr.mxu0 %v122
    %579 = vmatpush1.msra.mxu0 %v121
    %580 = vmatprep.subr.mxu0 0.0
    %581 = vmatpush1.msra.mxu0 0.0
    %582 = vmatprep.subr.mxu0 0.0
    %583 = vmatpush1.msra.mxu0 0.0
    %584 = vmatprep.subr.mxu0 0.0
    %585 = vmatpush1.msra.mxu0 0.0
    %586 = vmatprep.subr.mxu0 0.0
    %587 = vmatpush1.msra.mxu0 0.0
    %588 = vmatprep.subr.mxu0 0.0
    %589 = vmatpush1.msra.mxu0 0.0
    %590 = vmatprep.subr.mxu0 0.0
    %591 = vmatpush1.msra.mxu0 0.0
    %592 = vmatprep.subr.mxu0 0.0
    %593 = vmatpush1.msra.mxu0 0.0
    %594 = vmatprep.subr.mxu0 0.0
    %595 = vmatpush1.msra.mxu0 0.0
    %596 = vmatprep.subr.mxu0 0.0
    %597 = vmatpush1.msra.mxu0 0.0
    %598 = vmatprep.subr.mxu0 0.0
    %599 = vmatpush1.msra.mxu0 0.0
    %600 = vmatprep.subr.mxu0 0.0
    %601 = vmatpush1.msra.mxu0 0.0
    %602 = vmatprep.subr.mxu0 0.0
    %603 = vmatpush1.msra.mxu0 0.0
    %604 = vmatprep.subr.mxu0 0.0
    %605 = vmatpush1.msra.mxu0 0.0
    %606 = vmatprep.subr.mxu0 0.0
    %607 = vmatpush1.msra.mxu0 0.0
    %608 = vmatprep.subr.mxu0 0.0
    %609 = vmatpush1.msra.mxu0 0.0
    %610 = vmatprep.subr.mxu0 0.0
    %611 = vmatpush1.msra.mxu0 0.0
    %612 = vmatprep.mubr.f32.mxu0 0.0
    %613 = vmatmul.mubr.f32.gmra.mrb[0].mxu0 %v471
    %v614 = vpop.f32.mrb[0].mxu0
    %v615 = vadd.f32 0.0, %v614
    %v616 = vpop.f32.mrb[0].mxu0
    %v617 = vadd.f32 0.0, %v616
    %618 = vdwg.mxu0
    %v619 = vadd.f32 %v473, %v544
    %v620 = vadd.f32 %v474, %v546
    %v621 = vadd.f32 %v475, %v615
    %v622 = vadd.f32 %v476, %v617
    %v623 = vxor.u32 %v619, 2147483648
    %v624 = vmul.f32 %v623, 1.442695
    %v625 = vpow.pop %v624
    %v626 = vadd.f32 %v625, 1.0
    %v627 = vrcp.pop %v626
    %v628 = vmul.f32 1.0, %v627
    %v629 = vxor.u32 %v620, 2147483648
    %v630 = vmul.f32 %v629, 1.442695
    %v631 = vpow.pop %v630
    %v632 = vadd.f32 %v631, 1.0
    %v633 = vrcp.pop %v632
    %v634 = vmul.f32 1.0, %v633
    %v635 = vtanh.pop %v621
    %v636 = vxor.u32 %v622, 2147483648
    %v637 = vmul.f32 %v636, 1.442695
    %v638 = vpow.pop %v637
    %v639 = vadd.f32 %v638, 1.0
    %v640 = vrcp.pop %v639
    %v641 = vmul.f32 1.0, %v640
    %v642 = vmul.f32 %v634, %v469
    %v643 = vmul.f32 %v628, %v635
    %v644 = vadd.f32 %v642, %v643
    %v645 = vtanh.pop %v644
    %v646 = vmul.f32 %v641, %v645
    %s647 = scalar_lea.vmem [#allocation2], 96
    %v648 = vld [vmem:[%s647] sm:$0xff]
    %v649 = vld [vmem:[%s647 + $0x8] sm:$0xff]
    %v650 = vld [vmem:[%s647 + $0x10] sm:$0xff]
    %v651 = vld [vmem:[%s647 + $0x18] sm:$0xff]
    %652 = vmatprep.subr.mxu0 %v60
    %653 = vmatpush1.msra.mxu0 %v59
    %654 = vmatprep.subr.mxu0 %v64
    %655 = vmatpush1.msra.mxu0 %v63
    %656 = vmatprep.subr.mxu0 %v68
    %657 = vmatpush1.msra.mxu0 %v67
    %658 = vmatprep.subr.mxu0 %v72
    %659 = vmatpush1.msra.mxu0 %v71
    %660 = vmatprep.subr.mxu0 %v76
    %661 = vmatpush1.msra.mxu0 %v75
    %662 = vmatprep.subr.mxu0 %v80
    %663 = vmatpush1.msra.mxu0 %v79
    %664 = vmatprep.subr.mxu0 %v84
    %665 = vmatpush1.msra.mxu0 %v83
    %666 = vmatprep.subr.mxu0 %v88
    %667 = vmatpush1.msra.mxu0 %v87
    %668 = vmatprep.subr.mxu0 %v92
    %669 = vmatpush1.msra.mxu0 %v91
    %670 = vmatprep.subr.mxu0 %v96
    %671 = vmatpush1.msra.mxu0 %v95
    %672 = vmatprep.subr.mxu0 %v100
    %673 = vmatpush1.msra.mxu0 %v99
    %674 = vmatprep.subr.mxu0 %v104
    %675 = vmatpush1.msra.mxu0 %v103
    %676 = vmatprep.subr.mxu0 %v108
    %677 = vmatpush1.msra.mxu0 %v107
    %678 = vmatprep.subr.mxu0 %v112
    %679 = vmatpush1.msra.mxu0 %v111
    %680 = vmatprep.subr.mxu0 %v116
    %681 = vmatpush1.msra.mxu0 %v115
    %682 = vmatprep.subr.mxu0 %v120
    %683 = vmatpush1.msra.mxu0 %v119
    %684 = vmatprep.subr.mxu0 0.0
    %685 = vmatpush1.msra.mxu0 0.0
    %686 = vmatprep.subr.mxu0 0.0
    %687 = vmatpush1.msra.mxu0 0.0
    %688 = vmatprep.subr.mxu0 0.0
    %689 = vmatpush1.msra.mxu0 0.0
    %690 = vmatprep.subr.mxu0 0.0
    %691 = vmatpush1.msra.mxu0 0.0
    %692 = vmatprep.subr.mxu0 0.0
    %693 = vmatpush1.msra.mxu0 0.0
    %694 = vmatprep.subr.mxu0 0.0
    %695 = vmatpush1.msra.mxu0 0.0
    %696 = vmatprep.subr.mxu0 0.0
    %697 = vmatpush1.msra.mxu0 0.0
    %698 = vmatprep.subr.mxu0 0.0
    %699 = vmatpush1.msra.mxu0 0.0
    %700 = vmatprep.subr.mxu0 0.0
    %701 = vmatpush1.msra.mxu0 0.0
    %702 = vmatprep.subr.mxu0 0.0
    %703 = vmatpush1.msra.mxu0 0.0
    %704 = vmatprep.subr.mxu0 0.0
    %705 = vmatpush1.msra.mxu0 0.0
    %706 = vmatprep.subr.mxu0 0.0
    %707 = vmatpush1.msra.mxu0 0.0
    %708 = vmatprep.subr.mxu0 0.0
    %709 = vmatpush1.msra.mxu0 0.0
    %710 = vmatprep.subr.mxu0 0.0
    %711 = vmatpush1.msra.mxu0 0.0
    %712 = vmatprep.subr.mxu0 0.0
    %713 = vmatpush1.msra.mxu0 0.0
    %714 = vmatprep.subr.mxu0 0.0
    %715 = vmatpush1.msra.mxu0 0.0
    %716 = vmatprep.mubr.f32.mxu0 0.0
    %717 = vmatmul.mubr.f32.gmra.mrb[0].mxu0 %v646
    %v718 = vpop.f32.mrb[0].mxu0
    %v719 = vadd.f32 0.0, %v718
    %v720 = vpop.f32.mrb[0].mxu0
    %v721 = vadd.f32 0.0, %v720
    %722 = vdwg.mxu0
    %723 = vmatprep.subr.mxu0 %v62
    %724 = vmatpush1.msra.mxu0 %v61
    %725 = vmatprep.subr.mxu0 %v66
    %726 = vmatpush1.msra.mxu0 %v65
    %727 = vmatprep.subr.mxu0 %v70
    %728 = vmatpush1.msra.mxu0 %v69
    %729 = vmatprep.subr.mxu0 %v74
    %730 = vmatpush1.msra.mxu0 %v73
    %731 = vmatprep.subr.mxu0 %v78
    %732 = vmatpush1.msra.mxu0 %v77
    %733 = vmatprep.subr.mxu0 %v82
    %734 = vmatpush1.msra.mxu0 %v81
    %735 = vmatprep.subr.mxu0 %v86
    %736 = vmatpush1.msra.mxu0 %v85
    %737 = vmatprep.subr.mxu0 %v90
    %738 = vmatpush1.msra.mxu0 %v89
    %739 = vmatprep.subr.mxu0 %v94
    %740 = vmatpush1.msra.mxu0 %v93
    %741 = vmatprep.subr.mxu0 %v98
    %742 = vmatpush1.msra.mxu0 %v97
    %743 = vmatprep.subr.mxu0 %v102
    %744 = vmatpush1.msra.mxu0 %v101
    %745 = vmatprep.subr.mxu0 %v106
    %746 = vmatpush1.msra.mxu0 %v105
    %747 = vmatprep.subr.mxu0 %v110
    %748 = vmatpush1.msra.mxu0 %v109
    %749 = vmatprep.subr.mxu0 %v114
    %750 = vmatpush1.msra.mxu0 %v113
    %751 = vmatprep.subr.mxu0 %v118
    %752 = vmatpush1.msra.mxu0 %v117
    %753 = vmatprep.subr.mxu0 %v122
    %754 = vmatpush1.msra.mxu0 %v121
    %755 = vmatprep.subr.mxu0 0.0
    %756 = vmatpush1.msra.mxu0 0.0
    %757 = vmatprep.subr.mxu0 0.0
    %758 = vmatpush1.msra.mxu0 0.0
    %759 = vmatprep.subr.mxu0 0.0
    %760 = vmatpush1.msra.mxu0 0.0
    %761 = vmatprep.subr.mxu0 0.0
    %762 = vmatpush1.msra.mxu0 0.0
    %763 = vmatprep.subr.mxu0 0.0
    %764 = vmatpush1.msra.mxu0 0.0
    %765 = vmatprep.subr.mxu0 0.0
    %766 = vmatpush1.msra.mxu0 0.0
    %767 = vmatprep.subr.mxu0 0.0
    %768 = vmatpush1.msra.mxu0 0.0
    %769 = vmatprep.subr.mxu0 0.0
    %770 = vmatpush1.msra.mxu0 0.0
    %771 = vmatprep.subr.mxu0 0.0
    %772 = vmatpush1.msra.mxu0 0.0
    %773 = vmatprep.subr.mxu0 0.0
    %774 = vmatpush1.msra.mxu0 0.0
    %775 = vmatprep.subr.mxu0 0.0
    %776 = vmatpush1.msra.mxu0 0.0
    %777 = vmatprep.subr.mxu0 0.0
    %778 = vmatpush1.msra.mxu0 0.0
    %779 = vmatprep.subr.mxu0 0.0
    %780 = vmatpush1.msra.mxu0 0.0
    %781 = vmatprep.subr.mxu0 0.0
    %782 = vmatpush1.msra.mxu0 0.0
    %783 = vmatprep.subr.mxu0 0.0
    %784 = vmatpush1.msra.mxu0 0.0
    %785 = vmatprep.subr.mxu0 0.0
    %786 = vmatpush1.msra.mxu0 0.0
    %787 = vmatprep.mubr.f32.mxu0 0.0
    %788 = vmatmul.mubr.f32.gmra.mrb[0].mxu0 %v646
    %v789 = vpop.f32.mrb[0].mxu0
    %v790 = vadd.f32 0.0, %v789
    %v791 = vpop.f32.mrb[0].mxu0
    %v792 = vadd.f32 0.0, %v791
    %793 = vdwg.mxu0
    %v794 = vadd.f32 %v648, %v719
    %v795 = vadd.f32 %v649, %v721
    %v796 = vadd.f32 %v650, %v790
    %v797 = vadd.f32 %v651, %v792
    %v798 = vxor.u32 %v794, 2147483648
    %v799 = vmul.f32 %v798, 1.442695
    %v800 = vpow.pop %v799
    %v801 = vadd.f32 %v800, 1.0
    %v802 = vrcp.pop %v801
    %v803 = vmul.f32 1.0, %v802
    %v804 = vxor.u32 %v795, 2147483648
    %v805 = vmul.f32 %v804, 1.442695
    %v806 = vpow.pop %v805
    %v807 = vadd.f32 %v806, 1.0
    %v808 = vrcp.pop %v807
    %v809 = vmul.f32 1.0, %v808
    %v810 = vtanh.pop %v796
    %v811 = vxor.u32 %v797, 2147483648
    %v812 = vmul.f32 %v811, 1.442695
    %v813 = vpow.pop %v812
    %v814 = vadd.f32 %v813, 1.0
    %v815 = vrcp.pop %v814
    %v816 = vmul.f32 1.0, %v815
    %v817 = vmul.f32 %v809, %v644
    %v818 = vmul.f32 %v803, %v810
    %v819 = vadd.f32 %v817, %v818
    %v820 = vtanh.pop %v819
    %v821 = vmul.f32 %v816, %v820
    %s822 = scalar_lea.vmem [#allocation2], 128
    %v823 = vld [vmem:[%s822] sm:$0xff]
    %v824 = vld [vmem:[%s822 + $0x8] sm:$0xff]
    %v825 = vld [vmem:[%s822 + $0x10] sm:$0xff]
    %v826 = vld [vmem:[%s822 + $0x18] sm:$0xff]
    %827 = vmatprep.subr.mxu0 %v60
    %828 = vmatpush1.msra.mxu0 %v59
    %829 = vmatprep.subr.mxu0 %v64
    %830 = vmatpush1.msra.mxu0 %v63
    %831 = vmatprep.subr.mxu0 %v68
    %832 = vmatpush1.msra.mxu0 %v67
    %833 = vmatprep.subr.mxu0 %v72
    %834 = vmatpush1.msra.mxu0 %v71
    %835 = vmatprep.subr.mxu0 %v76
    %836 = vmatpush1.msra.mxu0 %v75
    %837 = vmatprep.subr.mxu0 %v80
    %838 = vmatpush1.msra.mxu0 %v79
    %839 = vmatprep.subr.mxu0 %v84
    %840 = vmatpush1.msra.mxu0 %v83
    %841 = vmatprep.subr.mxu0 %v88
    %842 = vmatpush1.msra.mxu0 %v87
    %843 = vmatprep.subr.mxu0 %v92
    %844 = vmatpush1.msra.mxu0 %v91
    %845 = vmatprep.subr.mxu0 %v96
    %846 = vmatpush1.msra.mxu0 %v95
    %847 = vmatprep.subr.mxu0 %v100
    %848 = vmatpush1.msra.mxu0 %v99
    %849 = vmatprep.subr.mxu0 %v104
    %850 = vmatpush1.msra.mxu0 %v103
    %851 = vmatprep.subr.mxu0 %v108
    %852 = vmatpush1.msra.mxu0 %v107
    %853 = vmatprep.subr.mxu0 %v112
    %854 = vmatpush1.msra.mxu0 %v111
    %855 = vmatprep.subr.mxu0 %v116
    %856 = vmatpush1.msra.mxu0 %v115
    %857 = vmatprep.subr.mxu0 %v120
    %858 = vmatpush1.msra.mxu0 %v119
    %859 = vmatprep.subr.mxu0 0.0
    %860 = vmatpush1.msra.mxu0 0.0
    %861 = vmatprep.subr.mxu0 0.0
    %862 = vmatpush1.msra.mxu0 0.0
    %863 = vmatprep.subr.mxu0 0.0
    %864 = vmatpush1.msra.mxu0 0.0
    %865 = vmatprep.subr.mxu0 0.0
    %866 = vmatpush1.msra.mxu0 0.0
    %867 = vmatprep.subr.mxu0 0.0
    %868 = vmatpush1.msra.mxu0 0.0
    %869 = vmatprep.subr.mxu0 0.0
    %870 = vmatpush1.msra.mxu0 0.0
    %871 = vmatprep.subr.mxu0 0.0
    %872 = vmatpush1.msra.mxu0 0.0
    %873 = vmatprep.subr.mxu0 0.0
    %874 = vmatpush1.msra.mxu0 0.0
    %875 = vmatprep.subr.mxu0 0.0
    %876 = vmatpush1.msra.mxu0 0.0
    %877 = vmatprep.subr.mxu0 0.0
    %878 = vmatpush1.msra.mxu0 0.0
    %879 = vmatprep.subr.mxu0 0.0
    %880 = vmatpush1.msra.mxu0 0.0
    %881 = vmatprep.subr.mxu0 0.0
    %882 = vmatpush1.msra.mxu0 0.0
    %883 = vmatprep.subr.mxu0 0.0
    %884 = vmatpush1.msra.mxu0 0.0
    %885 = vmatprep.subr.mxu0 0.0
    %886 = vmatpush1.msra.mxu0 0.0
    %887 = vmatprep.subr.mxu0 0.0
    %888 = vmatpush1.msra.mxu0 0.0
    %889 = vmatprep.subr.mxu0 0.0
    %890 = vmatpush1.msra.mxu0 0.0
    %891 = vmatprep.mubr.f32.mxu0 0.0
    %892 = vmatmul.mubr.f32.gmra.mrb[0].mxu0 %v821
    %v893 = vpop.f32.mrb[0].mxu0
    %v894 = vadd.f32 0.0, %v893
    %v895 = vpop.f32.mrb[0].mxu0
    %v896 = vadd.f32 0.0, %v895
    %897 = vdwg.mxu0
    %898 = vmatprep.subr.mxu0 %v62
    %899 = vmatpush1.msra.mxu0 %v61
    %900 = vmatprep.subr.mxu0 %v66
    %901 = vmatpush1.msra.mxu0 %v65
    %902 = vmatprep.subr.mxu0 %v70
    %903 = vmatpush1.msra.mxu0 %v69
    %904 = vmatprep.subr.mxu0 %v74
    %905 = vmatpush1.msra.mxu0 %v73
    %906 = vmatprep.subr.mxu0 %v78
    %907 = vmatpush1.msra.mxu0 %v77
    %908 = vmatprep.subr.mxu0 %v82
    %909 = vmatpush1.msra.mxu0 %v81
    %910 = vmatprep.subr.mxu0 %v86
    %911 = vmatpush1.msra.mxu0 %v85
    %912 = vmatprep.subr.mxu0 %v90
    %913 = vmatpush1.msra.mxu0 %v89
    %914 = vmatprep.subr.mxu0 %v94
    %915 = vmatpush1.msra.mxu0 %v93
    %916 = vmatprep.subr.mxu0 %v98
    %917 = vmatpush1.msra.mxu0 %v97
    %918 = vmatprep.subr.mxu0 %v102
    %919 = vmatpush1.msra.mxu0 %v101
    %920 = vmatprep.subr.mxu0 %v106
    %921 = vmatpush1.msra.mxu0 %v105
    %922 = vmatprep.subr.mxu0 %v110
    %923 = vmatpush1.msra.mxu0 %v109
    %924 = vmatprep.subr.mxu0 %v114
    %925 = vmatpush1.msra.mxu0 %v113
    %926 = vmatprep.subr.mxu0 %v118
    %927 = vmatpush1.msra.mxu0 %v117
    %928 = vmatprep.subr.mxu0 %v122
    %929 = vmatpush1.msra.mxu0 %v121
    %930 = vmatprep.subr.mxu0 0.0
    %931 = vmatpush1.msra.mxu0 0.0
    %932 = vmatprep.subr.mxu0 0.0
    %933 = vmatpush1.msra.mxu0 0.0
    %934 = vmatprep.subr.mxu0 0.0
    %935 = vmatpush1.msra.mxu0 0.0
    %936 = vmatprep.subr.mxu0 0.0
    %937 = vmatpush1.msra.mxu0 0.0
    %938 = vmatprep.subr.mxu0 0.0
    %939 = vmatpush1.msra.mxu0 0.0
    %940 = vmatprep.subr.mxu0 0.0
    %941 = vmatpush1.msra.mxu0 0.0
    %942 = vmatprep.subr.mxu0 0.0
    %943 = vmatpush1.msra.mxu0 0.0
    %944 = vmatprep.subr.mxu0 0.0
    %945 = vmatpush1.msra.mxu0 0.0
    %946 = vmatprep.subr.mxu0 0.0
    %947 = vmatpush1.msra.mxu0 0.0
    %948 = vmatprep.subr.mxu0 0.0
    %949 = vmatpush1.msra.mxu0 0.0
    %950 = vmatprep.subr.mxu0 0.0
    %951 = vmatpush1.msra.mxu0 0.0
    %952 = vmatprep.subr.mxu0 0.0
    %953 = vmatpush1.msra.mxu0 0.0
    %954 = vmatprep.subr.mxu0 0.0
    %955 = vmatpush1.msra.mxu0 0.0
    %956 = vmatprep.subr.mxu0 0.0
    %957 = vmatpush1.msra.mxu0 0.0
    %958 = vmatprep.subr.mxu0 0.0
    %959 = vmatpush1.msra.mxu0 0.0
    %960 = vmatprep.subr.mxu0 0.0
    %961 = vmatpush1.msra.mxu0 0.0
    %962 = vmatprep.mubr.f32.mxu0 0.0
    %963 = vmatmul.mubr.f32.gmra.mrb[0].mxu0 %v821
    %v964 = vpop.f32.mrb[0].mxu0
    %v965 = vadd.f32 0.0, %v964
    %v966 = vpop.f32.mrb[0].mxu0
    %v967 = vadd.f32 0.0, %v966
    %968 = vdwg.mxu0
    %v969 = vadd.f32 %v823, %v894
    %v970 = vadd.f32 %v824, %v896
    %v971 = vadd.f32 %v825, %v965
    %v972 = vadd.f32 %v826, %v967
    %v973 = vxor.u32 %v969, 2147483648
    %v974 = vmul.f32 %v973, 1.442695
    %v975 = vpow.pop %v974
    %v976 = vadd.f32 %v975, 1.0
    %v977 = vrcp.pop %v976
    %v978 = vmul.f32 1.0, %v977
    %v979 = vxor.u32 %v970, 2147483648
    %v980 = vmul.f32 %v979, 1.442695
    %v981 = vpow.pop %v980
    %v982 = vadd.f32 %v981, 1.0
    %v983 = vrcp.pop %v982
    %v984 = vmul.f32 1.0, %v983
    %v985 = vtanh.pop %v971
    %v986 = vxor.u32 %v972, 2147483648
    %v987 = vmul.f32 %v986, 1.442695
    %v988 = vpow.pop %v987
    %v989 = vadd.f32 %v988, 1.0
    %v990 = vrcp.pop %v989
    %v991 = vmul.f32 1.0, %v990
    %v992 = vmul.f32 %v984, %v819
    %v993 = vmul.f32 %v978, %v985
    %v994 = vadd.f32 %v992, %v993
    %v995 = vtanh.pop %v994
    %v996 = vmul.f32 %v991, %v995
    %s997 = scalar_lea.vmem [#allocation2], 160
    %v998 = vld [vmem:[%s997] sm:$0xff]
    %v999 = vld [vmem:[%s997 + $0x8] sm:$0xff]
    %v1000 = vld [vmem:[%s997 + $0x10] sm:$0xff]
    %v1001 = vld [vmem:[%s997 + $0x18] sm:$0xff]
    %1002 = vmatprep.subr.mxu0 %v60
    %1003 = vmatpush1.msra.mxu0 %v59
    %1004 = vmatprep.subr.mxu0 %v64
    %1005 = vmatpush1.msra.mxu0 %v63
    %1006 = vmatprep.subr.mxu0 %v68
    %1007 = vmatpush1.msra.mxu0 %v67
    %1008 = vmatprep.subr.mxu0 %v72
    %1009 = vmatpush1.msra.mxu0 %v71
    %1010 = vmatprep.subr.mxu0 %v76
    %1011 = vmatpush1.msra.mxu0 %v75
    %1012 = vmatprep.subr.mxu0 %v80
    %1013 = vmatpush1.msra.mxu0 %v79
    %1014 = vmatprep.subr.mxu0 %v84
    %1015 = vmatpush1.msra.mxu0 %v83
    %1016 = vmatprep.subr.mxu0 %v88
    %1017 = vmatpush1.msra.mxu0 %v87
    %1018 = vmatprep.subr.mxu0 %v92
    %1019 = vmatpush1.msra.mxu0 %v91
    %1020 = vmatprep.subr.mxu0 %v96
    %1021 = vmatpush1.msra.mxu0 %v95
    %1022 = vmatprep.subr.mxu0 %v100
    %1023 = vmatpush1.msra.mxu0 %v99
    %1024 = vmatprep.subr.mxu0 %v104
    %1025 = vmatpush1.msra.mxu0 %v103
    %1026 = vmatprep.subr.mxu0 %v108
    %1027 = vmatpush1.msra.mxu0 %v107
    %1028 = vmatprep.subr.mxu0 %v112
    %1029 = vmatpush1.msra.mxu0 %v111
    %1030 = vmatprep.subr.mxu0 %v116
    %1031 = vmatpush1.msra.mxu0 %v115
    %1032 = vmatprep.subr.mxu0 %v120
    %1033 = vmatpush1.msra.mxu0 %v119
    %1034 = vmatprep.subr.mxu0 0.0
    %1035 = vmatpush1.msra.mxu0 0.0
    %1036 = vmatprep.subr.mxu0 0.0
    %1037 = vmatpush1.msra.mxu0 0.0
    %1038 = vmatprep.subr.mxu0 0.0
    %1039 = vmatpush1.msra.mxu0 0.0
    %1040 = vmatprep.subr.mxu0 0.0
    %1041 = vmatpush1.msra.mxu0 0.0
    %1042 = vmatprep.subr.mxu0 0.0
    %1043 = vmatpush1.msra.mxu0 0.0
    %1044 = vmatprep.subr.mxu0 0.0
    %1045 = vmatpush1.msra.mxu0 0.0
    %1046 = vmatprep.subr.mxu0 0.0
    %1047 = vmatpush1.msra.mxu0 0.0
    %1048 = vmatprep.subr.mxu0 0.0
    %1049 = vmatpush1.msra.mxu0 0.0
    %1050 = vmatprep.subr.mxu0 0.0
    %1051 = vmatpush1.msra.mxu0 0.0
    %1052 = vmatprep.subr.mxu0 0.0
    %1053 = vmatpush1.msra.mxu0 0.0
    %1054 = vmatprep.subr.mxu0 0.0
    %1055 = vmatpush1.msra.mxu0 0.0
    %1056 = vmatprep.subr.mxu0 0.0
    %1057 = vmatpush1.msra.mxu0 0.0
    %1058 = vmatprep.subr.mxu0 0.0
    %1059 = vmatpush1.msra.mxu0 0.0
    %1060 = vmatprep.subr.mxu0 0.0
    %1061 = vmatpush1.msra.mxu0 0.0
    %1062 = vmatprep.subr.mxu0 0.0
    %1063 = vmatpush1.msra.mxu0 0.0
    %1064 = vmatprep.subr.mxu0 0.0
    %1065 = vmatpush1.msra.mxu0 0.0
    %1066 = vmatprep.mubr.f32.mxu0 0.0
    %1067 = vmatmul.mubr.f32.gmra.mrb[0].mxu0 %v996
    %v1068 = vpop.f32.mrb[0].mxu0
    %v1069 = vadd.f32 0.0, %v1068
    %v1070 = vpop.f32.mrb[0].mxu0
    %v1071 = vadd.f32 0.0, %v1070
    %1072 = vdwg.mxu0
    %1073 = vmatprep.subr.mxu0 %v62
    %1074 = vmatpush1.msra.mxu0 %v61
    %1075 = vmatprep.subr.mxu0 %v66
    %1076 = vmatpush1.msra.mxu0 %v65
    %1077 = vmatprep.subr.mxu0 %v70
    %1078 = vmatpush1.msra.mxu0 %v69
    %1079 = vmatprep.subr.mxu0 %v74
    %1080 = vmatpush1.msra.mxu0 %v73
    %1081 = vmatprep.subr.mxu0 %v78
    %1082 = vmatpush1.msra.mxu0 %v77
    %1083 = vmatprep.subr.mxu0 %v82
    %1084 = vmatpush1.msra.mxu0 %v81
    %1085 = vmatprep.subr.mxu0 %v86
    %1086 = vmatpush1.msra.mxu0 %v85
    %1087 = vmatprep.subr.mxu0 %v90
    %1088 = vmatpush1.msra.mxu0 %v89
    %1089 = vmatprep.subr.mxu0 %v94
    %1090 = vmatpush1.msra.mxu0 %v93
    %1091 = vmatprep.subr.mxu0 %v98
    %1092 = vmatpush1.msra.mxu0 %v97
    %1093 = vmatprep.subr.mxu0 %v102
    %1094 = vmatpush1.msra.mxu0 %v101
    %1095 = vmatprep.subr.mxu0 %v106
    %1096 = vmatpush1.msra.mxu0 %v105
    %1097 = vmatprep.subr.mxu0 %v110
    %1098 = vmatpush1.msra.mxu0 %v109
    %1099 = vmatprep.subr.mxu0 %v114
    %1100 = vmatpush1.msra.mxu0 %v113
    %1101 = vmatprep.subr.mxu0 %v118
    %1102 = vmatpush1.msra.mxu0 %v117
    %1103 = vmatprep.subr.mxu0 %v122
    %1104 = vmatpush1.msra.mxu0 %v121
    %1105 = vmatprep.subr.mxu0 0.0
    %1106 = vmatpush1.msra.mxu0 0.0
    %1107 = vmatprep.subr.mxu0 0.0
    %1108 = vmatpush1.msra.mxu0 0.0
    %1109 = vmatprep.subr.mxu0 0.0
    %1110 = vmatpush1.msra.mxu0 0.0
    %1111 = vmatprep.subr.mxu0 0.0
    %1112 = vmatpush1.msra.mxu0 0.0
    %1113 = vmatprep.subr.mxu0 0.0
    %1114 = vmatpush1.msra.mxu0 0.0
    %1115 = vmatprep.subr.mxu0 0.0
    %1116 = vmatpush1.msra.mxu0 0.0
    %1117 = vmatprep.subr.mxu0 0.0
    %1118 = vmatpush1.msra.mxu0 0.0
    %1119 = vmatprep.subr.mxu0 0.0
    %1120 = vmatpush1.msra.mxu0 0.0
    %1121 = vmatprep.subr.mxu0 0.0
    %1122 = vmatpush1.msra.mxu0 0.0
    %1123 = vmatprep.subr.mxu0 0.0
    %1124 = vmatpush1.msra.mxu0 0.0
    %1125 = vmatprep.subr.mxu0 0.0
    %1126 = vmatpush1.msra.mxu0 0.0
    %1127 = vmatprep.subr.mxu0 0.0
    %1128 = vmatpush1.msra.mxu0 0.0
    %1129 = vmatprep.subr.mxu0 0.0
    %1130 = vmatpush1.msra.mxu0 0.0
    %1131 = vmatprep.subr.mxu0 0.0
    %1132 = vmatpush1.msra.mxu0 0.0
    %1133 = vmatprep.subr.mxu0 0.0
    %1134 = vmatpush1.msra.mxu0 0.0
    %1135 = vmatprep.subr.mxu0 0.0
    %1136 = vmatpush1.msra.mxu0 0.0
    %1137 = vmatprep.mubr.f32.mxu0 0.0
    %1138 = vmatmul.mubr.f32.gmra.mrb[0].mxu0 %v996
    %v1139 = vpop.f32.mrb[0].mxu0
    %v1140 = vadd.f32 0.0, %v1139
    %v1141 = vpop.f32.mrb[0].mxu0
    %v1142 = vadd.f32 0.0, %v1141
    %1143 = vdwg.mxu0
    %v1144 = vadd.f32 %v998, %v1069
    %v1145 = vadd.f32 %v999, %v1071
    %v1146 = vadd.f32 %v1000, %v1140
    %v1147 = vadd.f32 %v1001, %v1142
    %v1148 = vxor.u32 %v1144, 2147483648
    %v1149 = vmul.f32 %v1148, 1.442695
    %v1150 = vpow.pop %v1149
    %v1151 = vadd.f32 %v1150, 1.0
    %v1152 = vrcp.pop %v1151
    %v1153 = vmul.f32 1.0, %v1152
    %v1154 = vxor.u32 %v1145, 2147483648
    %v1155 = vmul.f32 %v1154, 1.442695
    %v1156 = vpow.pop %v1155
    %v1157 = vadd.f32 %v1156, 1.0
    %v1158 = vrcp.pop %v1157
    %v1159 = vmul.f32 1.0, %v1158
    %v1160 = vtanh.pop %v1146
    %v1161 = vxor.u32 %v1147, 2147483648
    %v1162 = vmul.f32 %v1161, 1.442695
    %v1163 = vpow.pop %v1162
    %v1164 = vadd.f32 %v1163, 1.0
    %v1165 = vrcp.pop %v1164
    %v1166 = vmul.f32 1.0, %v1165
    %v1167 = vmul.f32 %v1159, %v994
    %v1168 = vmul.f32 %v1153, %v1160
    %v1169 = vadd.f32 %v1167, %v1168
    %v1170 = vtanh.pop %v1169
    %v1171 = vmul.f32 %v1166, %v1170
    %s1172 = scalar_lea.vmem [#allocation2], 192
    %v1173 = vld [vmem:[%s1172] sm:$0xff]
    %v1174 = vld [vmem:[%s1172 + $0x8] sm:$0xff]
    %v1175 = vld [vmem:[%s1172 + $0x10] sm:$0xff]
    %v1176 = vld [vmem:[%s1172 + $0x18] sm:$0xff]
    %1177 = vmatprep.subr.mxu0 %v60
    %1178 = vmatpush1.msra.mxu0 %v59
    %1179 = vmatprep.subr.mxu0 %v64
    %1180 = vmatpush1.msra.mxu0 %v63
    %1181 = vmatprep.subr.mxu0 %v68
    %1182 = vmatpush1.msra.mxu0 %v67
    %1183 = vmatprep.subr.mxu0 %v72
    %1184 = vmatpush1.msra.mxu0 %v71
    %1185 = vmatprep.subr.mxu0 %v76
    %1186 = vmatpush1.msra.mxu0 %v75
    %1187 = vmatprep.subr.mxu0 %v80
    %1188 = vmatpush1.msra.mxu0 %v79
    %1189 = vmatprep.subr.mxu0 %v84
    %1190 = vmatpush1.msra.mxu0 %v83
    %1191 = vmatprep.subr.mxu0 %v88
    %1192 = vmatpush1.msra.mxu0 %v87
    %1193 = vmatprep.subr.mxu0 %v92
    %1194 = vmatpush1.msra.mxu0 %v91
    %1195 = vmatprep.subr.mxu0 %v96
    %1196 = vmatpush1.msra.mxu0 %v95
    %1197 = vmatprep.subr.mxu0 %v100
    %1198 = vmatpush1.msra.mxu0 %v99
    %1199 = vmatprep.subr.mxu0 %v104
    %1200 = vmatpush1.msra.mxu0 %v103
    %1201 = vmatprep.subr.mxu0 %v108
    %1202 = vmatpush1.msra.mxu0 %v107
    %1203 = vmatprep.subr.mxu0 %v112
    %1204 = vmatpush1.msra.mxu0 %v111
    %1205 = vmatprep.subr.mxu0 %v116
    %1206 = vmatpush1.msra.mxu0 %v115
    %1207 = vmatprep.subr.mxu0 %v120
    %1208 = vmatpush1.msra.mxu0 %v119
    %1209 = vmatprep.subr.mxu0 0.0
    %1210 = vmatpush1.msra.mxu0 0.0
    %1211 = vmatprep.subr.mxu0 0.0
    %1212 = vmatpush1.msra.mxu0 0.0
    %1213 = vmatprep.subr.mxu0 0.0
    %1214 = vmatpush1.msra.mxu0 0.0
    %1215 = vmatprep.subr.mxu0 0.0
    %1216 = vmatpush1.msra.mxu0 0.0
    %1217 = vmatprep.subr.mxu0 0.0
    %1218 = vmatpush1.msra.mxu0 0.0
    %1219 = vmatprep.subr.mxu0 0.0
    %1220 = vmatpush1.msra.mxu0 0.0
    %1221 = vmatprep.subr.mxu0 0.0
    %1222 = vmatpush1.msra.mxu0 0.0
    %1223 = vmatprep.subr.mxu0 0.0
    %1224 = vmatpush1.msra.mxu0 0.0
    %1225 = vmatprep.subr.mxu0 0.0
    %1226 = vmatpush1.msra.mxu0 0.0
    %1227 = vmatprep.subr.mxu0 0.0
    %1228 = vmatpush1.msra.mxu0 0.0
    %1229 = vmatprep.subr.mxu0 0.0
    %1230 = vmatpush1.msra.mxu0 0.0
    %1231 = vmatprep.subr.mxu0 0.0
    %1232 = vmatpush1.msra.mxu0 0.0
    %1233 = vmatprep.subr.mxu0 0.0
    %1234 = vmatpush1.msra.mxu0 0.0
    %1235 = vmatprep.subr.mxu0 0.0
    %1236 = vmatpush1.msra.mxu0 0.0
    %1237 = vmatprep.subr.mxu0 0.0
    %1238 = vmatpush1.msra.mxu0 0.0
    %1239 = vmatprep.subr.mxu0 0.0
    %1240 = vmatpush1.msra.mxu0 0.0
    %1241 = vmatprep.mubr.f32.mxu0 0.0
    %1242 = vmatmul.mubr.f32.gmra.mrb[0].mxu0 %v1171
    %v1243 = vpop.f32.mrb[0].mxu0
    %v1244 = vadd.f32 0.0, %v1243
    %v1245 = vpop.f32.mrb[0].mxu0
    %v1246 = vadd.f32 0.0, %v1245
    %1247 = vdwg.mxu0
    %1248 = vmatprep.subr.mxu0 %v62
    %1249 = vmatpush1.msra.mxu0 %v61
    %1250 = vmatprep.subr.mxu0 %v66
    %1251 = vmatpush1.msra.mxu0 %v65
    %1252 = vmatprep.subr.mxu0 %v70
    %1253 = vmatpush1.msra.mxu0 %v69
    %1254 = vmatprep.subr.mxu0 %v74
    %1255 = vmatpush1.msra.mxu0 %v73
    %1256 = vmatprep.subr.mxu0 %v78
    %1257 = vmatpush1.msra.mxu0 %v77
    %1258 = vmatprep.subr.mxu0 %v82
    %1259 = vmatpush1.msra.mxu0 %v81
    %1260 = vmatprep.subr.mxu0 %v86
    %1261 = vmatpush1.msra.mxu0 %v85
    %1262 = vmatprep.subr.mxu0 %v90
    %1263 = vmatpush1.msra.mxu0 %v89
    %1264 = vmatprep.subr.mxu0 %v94
    %1265 = vmatpush1.msra.mxu0 %v93
    %1266 = vmatprep.subr.mxu0 %v98
    %1267 = vmatpush1.msra.mxu0 %v97
    %1268 = vmatprep.subr.mxu0 %v102
    %1269 = vmatpush1.msra.mxu0 %v101
    %1270 = vmatprep.subr.mxu0 %v106
    %1271 = vmatpush1.msra.mxu0 %v105
    %1272 = vmatprep.subr.mxu0 %v110
    %1273 = vmatpush1.msra.mxu0 %v109
    %1274 = vmatprep.subr.mxu0 %v114
    %1275 = vmatpush1.msra.mxu0 %v113
    %1276 = vmatprep.subr.mxu0 %v118
    %1277 = vmatpush1.msra.mxu0 %v117
    %1278 = vmatprep.subr.mxu0 %v122
    %1279 = vmatpush1.msra.mxu0 %v121
    %1280 = vmatprep.subr.mxu0 0.0
    %1281 = vmatpush1.msra.mxu0 0.0
    %1282 = vmatprep.subr.mxu0 0.0
    %1283 = vmatpush1.msra.mxu0 0.0
    %1284 = vmatprep.subr.mxu0 0.0
    %1285 = vmatpush1.msra.mxu0 0.0
    %1286 = vmatprep.subr.mxu0 0.0
    %1287 = vmatpush1.msra.mxu0 0.0
    %1288 = vmatprep.subr.mxu0 0.0
    %1289 = vmatpush1.msra.mxu0 0.0
    %1290 = vmatprep.subr.mxu0 0.0
    %1291 = vmatpush1.msra.mxu0 0.0
    %1292 = vmatprep.subr.mxu0 0.0
    %1293 = vmatpush1.msra.mxu0 0.0
    %1294 = vmatprep.subr.mxu0 0.0
    %1295 = vmatpush1.msra.mxu0 0.0
    %1296 = vmatprep.subr.mxu0 0.0
    %1297 = vmatpush1.msra.mxu0 0.0
    %1298 = vmatprep.subr.mxu0 0.0
    %1299 = vmatpush1.msra.mxu0 0.0
    %1300 = vmatprep.subr.mxu0 0.0
    %1301 = vmatpush1.msra.mxu0 0.0
    %1302 = vmatprep.subr.mxu0 0.0
    %1303 = vmatpush1.msra.mxu0 0.0
    %1304 = vmatprep.subr.mxu0 0.0
    %1305 = vmatpush1.msra.mxu0 0.0
    %1306 = vmatprep.subr.mxu0 0.0
    %1307 = vmatpush1.msra.mxu0 0.0
    %1308 = vmatprep.subr.mxu0 0.0
    %1309 = vmatpush1.msra.mxu0 0.0
    %1310 = vmatprep.subr.mxu0 0.0
    %1311 = vmatpush1.msra.mxu0 0.0
    %1312 = vmatprep.mubr.f32.mxu0 0.0
    %1313 = vmatmul.mubr.f32.gmra.mrb[0].mxu0 %v1171
    %v1314 = vpop.f32.mrb[0].mxu0
    %v1315 = vadd.f32 0.0, %v1314
    %v1316 = vpop.f32.mrb[0].mxu0
    %v1317 = vadd.f32 0.0, %v1316
    %1318 = vdwg.mxu0
    %v1319 = vadd.f32 %v1173, %v1244
    %v1320 = vadd.f32 %v1174, %v1246
    %v1321 = vadd.f32 %v1175, %v1315
    %v1322 = vadd.f32 %v1176, %v1317
    %v1323 = vxor.u32 %v1319, 2147483648
    %v1324 = vmul.f32 %v1323, 1.442695
    %v1325 = vpow.pop %v1324
    %v1326 = vadd.f32 %v1325, 1.0
    %v1327 = vrcp.pop %v1326
    %v1328 = vmul.f32 1.0, %v1327
    %v1329 = vxor.u32 %v1320, 2147483648
    %v1330 = vmul.f32 %v1329, 1.442695
    %v1331 = vpow.pop %v1330
    %v1332 = vadd.f32 %v1331, 1.0
    %v1333 = vrcp.pop %v1332
    %v1334 = vmul.f32 1.0, %v1333
    %v1335 = vtanh.pop %v1321
    %v1336 = vxor.u32 %v1322, 2147483648
    %v1337 = vmul.f32 %v1336, 1.442695
    %v1338 = vpow.pop %v1337
    %v1339 = vadd.f32 %v1338, 1.0
    %v1340 = vrcp.pop %v1339
    %v1341 = vmul.f32 1.0, %v1340
    %v1342 = vmul.f32 %v1334, %v1169
    %v1343 = vmul.f32 %v1328, %v1335
    %v1344 = vadd.f32 %v1342, %v1343
    %v1345 = vtanh.pop %v1344
    %v1346 = vmul.f32 %v1341, %v1345
    %s1347 = scalar_lea.vmem [#allocation2], 224
    %v1348 = vld [vmem:[%s1347] sm:$0xff]
    %v1349 = vld [vmem:[%s1347 + $0x8] sm:$0xff]
    %v1350 = vld [vmem:[%s1347 + $0x10] sm:$0xff]
    %v1351 = vld [vmem:[%s1347 + $0x18] sm:$0xff]
    %1352 = vmatprep.subr.mxu0 %v60
    %1353 = vmatpush1.msra.mxu0 %v59
    %1354 = vmatprep.subr.mxu0 %v64
    %1355 = vmatpush1.msra.mxu0 %v63
    %1356 = vmatprep.subr.mxu0 %v68
    %1357 = vmatpush1.msra.mxu0 %v67
    %1358 = vmatprep.subr.mxu0 %v72
    %1359 = vmatpush1.msra.mxu0 %v71
    %1360 = vmatprep.subr.mxu0 %v76
    %1361 = vmatpush1.msra.mxu0 %v75
    %1362 = vmatprep.subr.mxu0 %v80
    %1363 = vmatpush1.msra.mxu0 %v79
    %1364 = vmatprep.subr.mxu0 %v84
    %1365 = vmatpush1.msra.mxu0 %v83
    %1366 = vmatprep.subr.mxu0 %v88
    %1367 = vmatpush1.msra.mxu0 %v87
    %1368 = vmatprep.subr.mxu0 %v92
    %1369 = vmatpush1.msra.mxu0 %v91
    %1370 = vmatprep.subr.mxu0 %v96
    %1371 = vmatpush1.msra.mxu0 %v95
    %1372 = vmatprep.subr.mxu0 %v100
    %1373 = vmatpush1.msra.mxu0 %v99
    %1374 = vmatprep.subr.mxu0 %v104
    %1375 = vmatpush1.msra.mxu0 %v103
    %1376 = vmatprep.subr.mxu0 %v108
    %1377 = vmatpush1.msra.mxu0 %v107
    %1378 = vmatprep.subr.mxu0 %v112
    %1379 = vmatpush1.msra.mxu0 %v111
    %1380 = vmatprep.subr.mxu0 %v116
    %1381 = vmatpush1.msra.mxu0 %v115
    %1382 = vmatprep.subr.mxu0 %v120
    %1383 = vmatpush1.msra.mxu0 %v119
    %1384 = vmatprep.subr.mxu0 0.0
    %1385 = vmatpush1.msra.mxu0 0.0
    %1386 = vmatprep.subr.mxu0 0.0
    %1387 = vmatpush1.msra.mxu0 0.0
    %1388 = vmatprep.subr.mxu0 0.0
    %1389 = vmatpush1.msra.mxu0 0.0
    %1390 = vmatprep.subr.mxu0 0.0
    %1391 = vmatpush1.msra.mxu0 0.0
    %1392 = vmatprep.subr.mxu0 0.0
    %1393 = vmatpush1.msra.mxu0 0.0
    %1394 = vmatprep.subr.mxu0 0.0
    %1395 = vmatpush1.msra.mxu0 0.0
    %1396 = vmatprep.subr.mxu0 0.0
    %1397 = vmatpush1.msra.mxu0 0.0
    %1398 = vmatprep.subr.mxu0 0.0
    %1399 = vmatpush1.msra.mxu0 0.0
    %1400 = vmatprep.subr.mxu0 0.0
    %1401 = vmatpush1.msra.mxu0 0.0
    %1402 = vmatprep.subr.mxu0 0.0
    %1403 = vmatpush1.msra.mxu0 0.0
    %1404 = vmatprep.subr.mxu0 0.0
    %1405 = vmatpush1.msra.mxu0 0.0
    %1406 = vmatprep.subr.mxu0 0.0
    %1407 = vmatpush1.msra.mxu0 0.0
    %1408 = vmatprep.subr.mxu0 0.0
    %1409 = vmatpush1.msra.mxu0 0.0
    %1410 = vmatprep.subr.mxu0 0.0
    %1411 = vmatpush1.msra.mxu0 0.0
    %1412 = vmatprep.subr.mxu0 0.0
    %1413 = vmatpush1.msra.mxu0 0.0
    %1414 = vmatprep.subr.mxu0 0.0
    %1415 = vmatpush1.msra.mxu0 0.0
    %1416 = vmatprep.mubr.f32.mxu0 0.0
    %1417 = vmatmul.mubr.f32.gmra.mrb[0].mxu0 %v1346
    %v1418 = vpop.f32.mrb[0].mxu0
    %v1419 = vadd.f32 0.0, %v1418
    %v1420 = vpop.f32.mrb[0].mxu0
    %v1421 = vadd.f32 0.0, %v1420
    %1422 = vdwg.mxu0
    %1423 = vmatprep.subr.mxu0 %v62
    %1424 = vmatpush1.msra.mxu0 %v61
    %1425 = vmatprep.subr.mxu0 %v66
    %1426 = vmatpush1.msra.mxu0 %v65
    %1427 = vmatprep.subr.mxu0 %v70
    %1428 = vmatpush1.msra.mxu0 %v69
    %1429 = vmatprep.subr.mxu0 %v74
    %1430 = vmatpush1.msra.mxu0 %v73
    %1431 = vmatprep.subr.mxu0 %v78
    %1432 = vmatpush1.msra.mxu0 %v77
    %1433 = vmatprep.subr.mxu0 %v82
    %1434 = vmatpush1.msra.mxu0 %v81
    %1435 = vmatprep.subr.mxu0 %v86
    %1436 = vmatpush1.msra.mxu0 %v85
    %1437 = vmatprep.subr.mxu0 %v90
    %1438 = vmatpush1.msra.mxu0 %v89
    %1439 = vmatprep.subr.mxu0 %v94
    %1440 = vmatpush1.msra.mxu0 %v93
    %1441 = vmatprep.subr.mxu0 %v98
    %1442 = vmatpush1.msra.mxu0 %v97
    %1443 = vmatprep.subr.mxu0 %v102
    %1444 = vmatpush1.msra.mxu0 %v101
    %1445 = vmatprep.subr.mxu0 %v106
    %1446 = vmatpush1.msra.mxu0 %v105
    %1447 = vmatprep.subr.mxu0 %v110
    %1448 = vmatpush1.msra.mxu0 %v109
    %1449 = vmatprep.subr.mxu0 %v114
    %1450 = vmatpush1.msra.mxu0 %v113
    %1451 = vmatprep.subr.mxu0 %v118
    %1452 = vmatpush1.msra.mxu0 %v117
    %1453 = vmatprep.subr.mxu0 %v122
    %1454 = vmatpush1.msra.mxu0 %v121
    %1455 = vmatprep.subr.mxu0 0.0
    %1456 = vmatpush1.msra.mxu0 0.0
    %1457 = vmatprep.subr.mxu0 0.0
    %1458 = vmatpush1.msra.mxu0 0.0
    %1459 = vmatprep.subr.mxu0 0.0
    %1460 = vmatpush1.msra.mxu0 0.0
    %1461 = vmatprep.subr.mxu0 0.0
    %1462 = vmatpush1.msra.mxu0 0.0
    %1463 = vmatprep.subr.mxu0 0.0
    %1464 = vmatpush1.msra.mxu0 0.0
    %1465 = vmatprep.subr.mxu0 0.0
    %1466 = vmatpush1.msra.mxu0 0.0
    %1467 = vmatprep.subr.mxu0 0.0
    %1468 = vmatpush1.msra.mxu0 0.0
    %1469 = vmatprep.subr.mxu0 0.0
    %1470 = vmatpush1.msra.mxu0 0.0
    %1471 = vmatprep.subr.mxu0 0.0
    %1472 = vmatpush1.msra.mxu0 0.0
    %1473 = vmatprep.subr.mxu0 0.0
    %1474 = vmatpush1.msra.mxu0 0.0
    %1475 = vmatprep.subr.mxu0 0.0
    %1476 = vmatpush1.msra.mxu0 0.0
    %1477 = vmatprep.subr.mxu0 0.0
    %1478 = vmatpush1.msra.mxu0 0.0
    %1479 = vmatprep.subr.mxu0 0.0
    %1480 = vmatpush1.msra.mxu0 0.0
    %1481 = vmatprep.subr.mxu0 0.0
    %1482 = vmatpush1.msra.mxu0 0.0
    %1483 = vmatprep.subr.mxu0 0.0
    %1484 = vmatpush1.msra.mxu0 0.0
    %1485 = vmatprep.subr.mxu0 0.0
    %1486 = vmatpush1.msra.mxu0 0.0
    %1487 = vmatprep.mubr.f32.mxu0 0.0
    %1488 = vmatmul.mubr.f32.gmra.mrb[0].mxu0 %v1346
    %v1489 = vpop.f32.mrb[0].mxu0
    %v1490 = vadd.f32 0.0, %v1489
    %v1491 = vpop.f32.mrb[0].mxu0
    %v1492 = vadd.f32 0.0, %v1491
    %1493 = vdwg.mxu0
    %v1494 = vadd.f32 %v1348, %v1419
    %v1495 = vadd.f32 %v1349, %v1421
    %v1496 = vadd.f32 %v1350, %v1490
    %v1497 = vadd.f32 %v1351, %v1492
    %v1498 = vxor.u32 %v1494, 2147483648
    %v1499 = vmul.f32 %v1498, 1.442695
    %v1500 = vpow.pop %v1499
    %v1501 = vadd.f32 %v1500, 1.0
    %v1502 = vrcp.pop %v1501
    %v1503 = vmul.f32 1.0, %v1502
    %v1504 = vxor.u32 %v1495, 2147483648
    %v1505 = vmul.f32 %v1504, 1.442695
    %v1506 = vpow.pop %v1505
    %v1507 = vadd.f32 %v1506, 1.0
    %v1508 = vrcp.pop %v1507
    %v1509 = vmul.f32 1.0, %v1508
    %v1510 = vtanh.pop %v1496
    %v1511 = vxor.u32 %v1497, 2147483648
    %v1512 = vmul.f32 %v1511, 1.442695
    %v1513 = vpow.pop %v1512
    %v1514 = vadd.f32 %v1513, 1.0
    %v1515 = vrcp.pop %v1514
    %v1516 = vmul.f32 1.0, %v1515
    %v1517 = vmul.f32 %v1509, %v1344
    %v1518 = vmul.f32 %v1503, %v1510
    %v1519 = vadd.f32 %v1517, %v1518
    %v1520 = vtanh.pop %v1519
    %v1521 = vmul.f32 %v1516, %v1520
    %v1522 = vld [vmem:[#allocation7] sm:$0xff]
    %v1523 = vld [vmem:[#allocation7 + $0x8] sm:$0xff]
    %v1524 = vld [vmem:[#allocation7 + $0x10] sm:$0xff]
    %v1525 = vld [vmem:[#allocation7 + $0x18] sm:$0xff]
    %v1526 = vld [vmem:[#allocation7 + $0x20] sm:$0xff]
    %v1527 = vld [vmem:[#allocation7 + $0x28] sm:$0xff]
    %v1528 = vld [vmem:[#allocation7 + $0x30] sm:$0xff]
    %v1529 = vld [vmem:[#allocation7 + $0x38] sm:$0xff]
    %v1530 = vld [vmem:[#allocation7 + $0x40] sm:$0xff]
    %v1531 = vld [vmem:[#allocation7 + $0x48] sm:$0xff]
    %v1532 = vld [vmem:[#allocation7 + $0x50] sm:$0xff]
    %v1533 = vld [vmem:[#allocation7 + $0x58] sm:$0xff]
    %v1534 = vld [vmem:[#allocation7 + $0x60] sm:$0xff]
    %v1535 = vld [vmem:[#allocation7 + $0x68] sm:$0xff]
    %v1536 = vld [vmem:[#allocation7 + $0x70] sm:$0xff]
    %v1537 = vld [vmem:[#allocation7 + $0x78] sm:$0xff]
    %v1538 = vld [vmem:[%s3] sm:$0x1]
    %v1540 = vlaneseq
    %v1541 = vshrl.u32 %v1540, 7
    %v1542 = vsub.s32 0, %v1541
    %v1543 = vrot.slane %v1538, %v1542
    %1545 = vmatprep.subr.mxu0 0.0
    %1546 = vmatpush1.msra.mxu0 %v1522
    %1547 = vmatprep.subr.mxu0 0.0
    %1548 = vmatpush1.msra.mxu0 %v1523
    %1549 = vmatprep.subr.mxu0 0.0
    %1550 = vmatpush1.msra.mxu0 %v1524
    %1551 = vmatprep.subr.mxu0 0.0
    %1552 = vmatpush1.msra.mxu0 %v1525
    %1553 = vmatprep.subr.mxu0 0.0
    %1554 = vmatpush1.msra.mxu0 %v1526
    %1555 = vmatprep.subr.mxu0 0.0
    %1556 = vmatpush1.msra.mxu0 %v1527
    %1557 = vmatprep.subr.mxu0 0.0
    %1558 = vmatpush1.msra.mxu0 %v1528
    %1559 = vmatprep.subr.mxu0 0.0
    %1560 = vmatpush1.msra.mxu0 %v1529
    %1561 = vmatprep.subr.mxu0 0.0
    %1562 = vmatpush1.msra.mxu0 %v1530
    %1563 = vmatprep.subr.mxu0 0.0
    %1564 = vmatpush1.msra.mxu0 %v1531
    %1565 = vmatprep.subr.mxu0 0.0
    %1566 = vmatpush1.msra.mxu0 %v1532
    %1567 = vmatprep.subr.mxu0 0.0
    %1568 = vmatpush1.msra.mxu0 %v1533
    %1569 = vmatprep.subr.mxu0 0.0
    %1570 = vmatpush1.msra.mxu0 %v1534
    %1571 = vmatprep.subr.mxu0 0.0
    %1572 = vmatpush1.msra.mxu0 %v1535
    %1573 = vmatprep.subr.mxu0 0.0
    %1574 = vmatpush1.msra.mxu0 %v1536
    %1575 = vmatprep.subr.mxu0 0.0
    %1576 = vmatpush1.msra.mxu0 %v1537
    %1577 = vmatprep.subr.mxu0 0.0
    %1578 = vmatpush1.msra.mxu0 0.0
    %1579 = vmatprep.subr.mxu0 0.0
    %1580 = vmatpush1.msra.mxu0 0.0
    %1581 = vmatprep.subr.mxu0 0.0
    %1582 = vmatpush1.msra.mxu0 0.0
    %1583 = vmatprep.subr.mxu0 0.0
    %1584 = vmatpush1.msra.mxu0 0.0
    %1585 = vmatprep.subr.mxu0 0.0
    %1586 = vmatpush1.msra.mxu0 0.0
    %1587 = vmatprep.subr.mxu0 0.0
    %1588 = vmatpush1.msra.mxu0 0.0
    %1589 = vmatprep.subr.mxu0 0.0
    %1590 = vmatpush1.msra.mxu0 0.0
    %1591 = vmatprep.subr.mxu0 0.0
    %1592 = vmatpush1.msra.mxu0 0.0
    %1593 = vmatprep.subr.mxu0 0.0
    %1594 = vmatpush1.msra.mxu0 0.0
    %1595 = vmatprep.subr.mxu0 0.0
    %1596 = vmatpush1.msra.mxu0 0.0
    %1597 = vmatprep.subr.mxu0 0.0
    %1598 = vmatpush1.msra.mxu0 0.0
    %1599 = vmatprep.subr.mxu0 0.0
    %1600 = vmatpush1.msra.mxu0 0.0
    %1601 = vmatprep.subr.mxu0 0.0
    %1602 = vmatpush1.msra.mxu0 0.0
    %1603 = vmatprep.subr.mxu0 0.0
    %1604 = vmatpush1.msra.mxu0 0.0
    %1605 = vmatprep.subr.mxu0 0.0
    %1606 = vmatpush1.msra.mxu0 0.0
    %1607 = vmatprep.subr.mxu0 0.0
    %1608 = vmatpush1.msra.mxu0 0.0
    %1609 = vmatprep.mubr.f32.mxu0 0.0
    %1610 = vmatmul.mubr.f32.gmra.mrb[0].mxu0 %v1521
    %v1611 = vpop.f32.mrb[0].mxu0
    %v1612 = vadd.f32 %v1543, %v1611
    %v1613 = vpop.f32.mrb[0].mxu0
    %1614 = vdwg.mxu0
    %1615 = vst [vmem:[#allocation8] sm:$0xff] %v1612
    // Predicated region
    $region30: #{tpu_custom_call.1} parent=1 // pred_check
      _
    $region31: #{tpu_custom_call.1} parent=1 // pred_check_branch
      %1617 = sbr.rel (0) target = $region33
    $region32: #{tpu_custom_call.1} parent=1 // pred_region
      %s1619 = ssub.s32 128, 128
      %1620 = vsyncadd [#allocation4], %s1619
      %s1622 = sshll.u32 [#allocation8], 4
      %s1623 = int_to_ptr.vmem [resolvable:$true] %s1622
      %1625 = dma.vmem_to_hbm [thread:$0]  %s1623, 128, %s4, [#allocation4]
    $region33: #{tpu_custom_call.1} parent=1 // pred_fallthru
      _
    // Predicated region
    $region34: #{tpu_custom_call.1} parent=1 // pred_check
      _
    $region35: #{tpu_custom_call.1} parent=1 // pred_check_branch
      %1627 = sbr.rel (0) target = $region37
    $region36: #{tpu_custom_call.1} parent=1 // pred_region
      %1628 = dma.done [#allocation4], 128
    $region37: #{tpu_custom_call.1} parent=1 // pred_fallthru
      _
    %1629 = vsyncpa [#allocation3], 1
    %1630 = vsyncpa [#allocation6], 1
    %1631 = vsyncpa [#allocation4], 1

</llo_original>
